<compile_context>
chip_gen: v6e
topology: v6e:2x2x1
jax: 0.10.0
libtpu: 0.0.40
codegen_flags: <defaults>
</compile_context>

<pallas_src>
import functools
import math

import jax
import jax.numpy as jnp
from jax.experimental import pallas as pl
from jax.experimental.pallas import tpu as pltpu


# ----------------------------------------------------------------------------
# Fused encoder-stack kernel
# ----------------------------------------------------------------------------

def encoder_stack_kernel(x0_ref, amask_ref,
                         wqkv_ref, bqkv_ref, wo_ref, bo_ref,
                         g1_ref, be1_ref,
                         w1_ref, b1_ref, w2_ref, b2_ref,
                         g2_ref, be2_ref,
                         out_ref,
                         *, nb, seq, n_heads, d_k, d_model):
    """grid = (batch_blocks, n_layers).  One full encoder layer per inner grid step.
    Activations live in out_ref, which is VMEM-resident across the layer axis (its
    block index does not depend on the layer grid index)."""
    l = pl.program_id(1)
    n = nb * seq                                         # rows in this batch block
    D = d_model

    # Layer 0: initialize the resident output block with (embed*sqrt(d) + PE).
    @pl.when(l == 0)
    def _():
        out_ref[...] = x0_ref[...]

    x = out_ref[...]                                     # [n, D] f32 (carried activations)
    x_bf = x.astype(jnp.bfloat16)                        # bf16 feeds the MXU

    # ---- fused QKV projection: one fat matmul, K=D, N=3D -------------------------
    qkv = jnp.dot(x_bf, wqkv_ref[...],
                  preferred_element_type=jnp.float32) + bqkv_ref[...]   # [n, 3D] f32
    qkv_bf = qkv.astype(jnp.bfloat16)                    # single cast for K/V slices

    scale = jnp.float32(1.0 / math.sqrt(d_k))
    # Hoist the mask broadcast out of the head loop (broadcasts are not CSE'd).
    amask_b = jnp.broadcast_to(amask_ref[...], (nb, seq, seq))          # [nb, S, S]

    # ---- per-head score / softmax / context (small S x dk contractions) ----------
    ctx_heads = []
    for h in range(n_heads):                             # static unroll (n_heads small)
        # scale folded into q: O(S*dk) VPU work instead of O(S^2)
        q = (qkv[:, h * d_k:(h + 1) * d_k] * scale).astype(jnp.bfloat16).reshape(nb, seq, d_k)
        k = qkv_bf[:, D + h * d_k:D + (h + 1) * d_k].reshape(nb, seq, d_k)
        v = qkv_bf[:, 2 * D + h * d_k:2 * D + (h + 1) * d_k].reshape(nb, seq, d_k)
        s = jnp.einsum('bqd,bkd->bqk', q, k,
                       preferred_element_type=jnp.float32)              # [nb, S, S] f32
        s = s + amask_b                                  # additive mask (precomputed *-1e9)
        m = jnp.max(s, axis=-1, keepdims=True)
        e = jnp.exp(s - m)
        p = e * pl.reciprocal(jnp.sum(e, axis=-1, keepdims=True), approx=True)
        ctx = jnp.einsum('bqk,bkd->bqd', p.astype(jnp.bfloat16), v,
                         preferred_element_type=jnp.float32)            # [nb, S, dk]
        ctx_heads.append(ctx.reshape(n, d_k))
    # TODO(synk): for large S switch to a key-blocked (flash-style) online-softmax loop;
    # the [nb, S, S] scores are fully materialized here.

    # Heads contiguous on the lane dim (== torch concat order) -> ONE K=D output matmul.
    ctx_all = jnp.concatenate(ctx_heads, axis=-1)                       # [n, D] f32
    attn = jnp.dot(ctx_all.astype(jnp.bfloat16), wo_ref[...],
                   preferred_element_type=jnp.float32) + bo_ref[...]

    # ---- residual + LayerNorm 1 (f32 stats) ----
    y = x + attn
    mu = jnp.mean(y, axis=-1, keepdims=True)
    var = jnp.mean((y - mu) ** 2, axis=-1, keepdims=True)
    y = (y - mu) * jax.lax.rsqrt(var + 1e-5) * g1_ref[...] + be1_ref[...]

    # ---- position-wise FFN (bf16 MXU, f32 accumulate, ReLU in f32) ----
    h1 = jnp.dot(y.astype(jnp.bfloat16), w1_ref[...],
                 preferred_element_type=jnp.float32) + b1_ref[...]
    h1 = jnp.maximum(h1, 0.0)
    ff = jnp.dot(h1.astype(jnp.bfloat16), w2_ref[...],
                 preferred_element_type=jnp.float32) + b2_ref[...]

    # ---- residual + LayerNorm 2 ----
    z = y + ff
    mu2 = jnp.mean(z, axis=-1, keepdims=True)
    var2 = jnp.mean((z - mu2) ** 2, axis=-1, keepdims=True)
    z = (z - mu2) * jax.lax.rsqrt(var2 + 1e-5) * g2_ref[...] + be2_ref[...]

    out_ref[...] = z                                     # carried to next layer; final layer's
                                                         # value is what Pallas writes back to HBM


# ----------------------------------------------------------------------------
# Wrapper
# ----------------------------------------------------------------------------

def encoder_forward(enc_inputs, enc_mask, emb_table, pe_table, params,
                    d_model, n_heads, *, batch_block=None):
    """enc_inputs: [B, S] int32 tokens; enc_mask: [B, 1, S] float (1.0 = pad/masked)."""
    B, S = enc_inputs.shape
    D = d_model
    H = n_heads
    dk = D // H
    L = params["wqkv"].shape[0]
    F = params["w1"].shape[-1]

    if batch_block is None:
        # Fully fused (one batch block): best for single-TC v5e/v6e at small sizes.
        # TODO(synk): on v7x pass batch_block = B // 2 so the "parallel" axis spans both TCs.
        batch_block = B
    assert B % batch_block == 0
    nbb = B // batch_block
    nrows = batch_block * S

    # Embedding gather + sqrt(d_model) scale + positional encoding in plain JAX
    # (XLA fuses this into the gather; avoids an extra pallas_call + HBM round trip).
    x0 = (emb_table[enc_inputs] * jnp.float32(math.sqrt(d_model))
          + pe_table[:S][None, :, :]).reshape(B * S, D).astype(jnp.float32)

    # Additive attention mask precomputed once in the wrapper (1.0 == masked -> -1e9).
    amask = (enc_mask * jnp.float32(-1e9)).astype(jnp.float32)          # [B, 1, S]

    def wspec(shape):
        # Per-layer parameter block: squeeze the layer axis, stream by layer index.
        nd = len(shape)
        zeros = (0,) * nd
        return pl.BlockSpec((None,) + tuple(shape), lambda i, l, z=zeros: (l,) + z)

    in_specs = [
        pl.BlockSpec((nrows, D), lambda i, l: (i, 0)),                  # x0 (flattened rows)
        pl.BlockSpec((batch_block, 1, S), lambda i, l: (i, 0, 0)),      # additive mask
        wspec((D, 3 * D)), wspec((1, 3 * D)),                           # fused wqkv, bqkv
        wspec((D, D)), wspec((1, D)),                                   # wo, bo
        wspec((1, D)), wspec((1, D)),                                   # layernorm1 gamma, beta
        wspec((D, F)), wspec((1, F)),                                   # w1, b1
        wspec((F, D)), wspec((1, D)),                                   # w2, b2
        wspec((1, D)), wspec((1, D)),                                   # layernorm2 gamma, beta
    ]

    # VMEM budget: double-buffered per-layer bf16 weights + f32 biases + resident
    # activation blocks + headroom; clamp below v7x's 64 MiB physical VMEM.
    wl_bytes = 2 * (D * 3 * D + D * D + D * F + F * D)                  # bf16 weights / layer
    bl_bytes = 4 * (3 * D + D + F + 5 * D)                              # f32 biases+LN / layer
    act_bytes = 2 * nrows * D * 4 + batch_block * S * 4
    vmem_limit = int(min(48 * 2**20,
                         max(32 * 2**20, 4 * (wl_bytes + bl_bytes) + 4 * act_bytes)))

    kernel = functools.partial(encoder_stack_kernel,
                               nb=batch_block, seq=S, n_heads=H, d_k=dk, d_model=D)

    out = pl.pallas_call(
        kernel,
        out_shape=jax.ShapeDtypeStruct((B * S, D), jnp.float32),
        grid=(nbb, L),
        in_specs=in_specs,
        # Output block index is constant over the layer axis -> it stays VMEM-resident
        # across layers and doubles as the carried activation buffer.
        out_specs=pl.BlockSpec((nrows, D), lambda i, l: (i, 0)),
        compiler_params=pltpu.CompilerParams(
            dimension_semantics=("parallel", "arbitrary"),
            vmem_limit_bytes=vmem_limit),
    )(x0, amask,
      params["wqkv"], params["bqkv"], params["wo"], params["bo"],
      params["ln1_g"], params["ln1_b"],
      params["w1"], params["b1"], params["w2"], params["b2"],
      params["ln2_g"], params["ln2_b"])

    return out.reshape(B, S, D)


# ----------------------------------------------------------------------------
# Parameter construction
# ----------------------------------------------------------------------------

def sinusoidal_pe(max_seq_len, d_model):
    pos = jnp.arange(max_seq_len, dtype=jnp.float32)[:, None]            # [L, 1]
    i = jnp.arange(0, d_model, 2, dtype=jnp.float32)[None, :]            # [1, D/2]
    div = jnp.exp(-i * (math.log(10000.0) / d_model))
    pe = jnp.zeros((max_seq_len, d_model), dtype=jnp.float32)
    pe = pe.at[:, 0::2].set(jnp.sin(pos * div))
    pe = pe.at[:, 1::2].set(jnp.cos(pos * div))
    return pe


def make_params(key, n_layers, d_model, d_ffn, n_heads):
    """Stacked per-layer params.  Q/K/V weights are fused to a single [D, 3D] matrix
    (head h of each block = cols h*dk:(h+1)*dk); matmul weights cast to bf16 (MXU
    operands); biases / LayerNorm params stay f32."""
    keys = jax.random.split(key, n_layers)
    s_attn = 1.0 / math.sqrt(d_model)
    s_ffn = 1.0 / math.sqrt(d_ffn)

    names = ("wqkv", "bqkv", "wo", "bo", "ln1_g", "ln1_b",
             "w1", "b1", "w2", "b2", "ln2_g", "ln2_b")
    acc = {k: [] for k in names}
    for li in range(n_layers):
        ks = jax.random.split(keys[li], 6)
        wq = jax.random.normal(ks[0], (d_model, d_model), jnp.float32) * s_attn
        wk = jax.random.normal(ks[1], (d_model, d_model), jnp.float32) * s_attn
        wv = jax.random.normal(ks[2], (d_model, d_model), jnp.float32) * s_attn
        wo = jax.random.normal(ks[3], (d_model, d_model), jnp.float32) * s_attn
        w1 = jax.random.normal(ks[4], (d_model, d_ffn), jnp.float32) * s_attn
        w2 = jax.random.normal(ks[5], (d_ffn, d_model), jnp.float32) * s_ffn
        acc["wqkv"].append(jnp.concatenate([wq, wk, wv], axis=1))        # [D, 3D]
        acc["bqkv"].append(jnp.zeros((1, 3 * d_model), jnp.float32))
        acc["wo"].append(wo)
        acc["bo"].append(jnp.zeros((1, d_model), jnp.float32))
        acc["ln1_g"].append(jnp.ones((1, d_model), jnp.float32))
        acc["ln1_b"].append(jnp.zeros((1, d_model), jnp.float32))
        acc["w1"].append(w1)
        acc["b1"].append(jnp.zeros((1, d_ffn), jnp.float32))
        acc["w2"].append(w2)
        acc["b2"].append(jnp.zeros((1, d_model), jnp.float32))
        acc["ln2_g"].append(jnp.ones((1, d_model), jnp.float32))
        acc["ln2_b"].append(jnp.zeros((1, d_model), jnp.float32))

    params = {k: jnp.stack(v) for k, v in acc.items()}
    for k in ("wqkv", "wo", "w1", "w2"):                 # bf16 MXU operands
        params[k] = params[k].astype(jnp.bfloat16)
    return params


# ----------------------------------------------------------------------------
# main
# ----------------------------------------------------------------------------

if __name__ == "__main__":
    n_layers = 2
    d_model = 128            # multiple of 128 -> lane-dense activation loads/stores
    d_ffn = 256
    n_heads = 4
    max_seq_len = 16
    src_vocab_size = 50

    batch = 2
    seq_len = 8

    key = jax.random.PRNGKey(0)
    k_emb, k_param, k_tok = jax.random.split(key, 3)

    emb_table = jax.random.normal(k_emb, (src_vocab_size, d_model), jnp.float32) * 0.02
    params = make_params(k_param, n_layers, d_model, d_ffn, n_heads)
    pe_table = sinusoidal_pe(max_seq_len, d_model)

    enc_inputs = jax.random.randint(k_tok, (batch, seq_len), 0, src_vocab_size, dtype=jnp.int32)
    # mask: last two key positions of batch element 1 are padding (1.0 = masked)
    enc_mask = jnp.zeros((batch, 1, seq_len), jnp.float32)
    enc_mask = enc_mask.at[1, 0, seq_len - 2:].set(1.0)

    out = encoder_forward(enc_inputs, enc_mask, emb_table, pe_table, params,
                          d_model, n_heads)
    out = jax.block_until_ready(out)
    assert out.shape == (batch, seq_len, d_model)
    assert bool(jnp.all(jnp.isfinite(out)))
    print("KERNEL_OK")
</pallas_src>

<mosaic_0001>
module attributes {stable_mosaic.version = 11 : i64} {
  func.func @encoder_stack_kernel(%arg0: i32, %arg1: i32, %arg2: memref<16x128xf32, #tpu.memory_space<vmem>>, %arg3: memref<2x1x8xf32, #tpu.memory_space<vmem>>, %arg4: memref<1x128x384xbf16, #tpu.memory_space<vmem>>, %arg5: memref<1x1x384xf32, #tpu.memory_space<vmem>>, %arg6: memref<1x128x128xbf16, #tpu.memory_space<vmem>>, %arg7: memref<1x1x128xf32, #tpu.memory_space<vmem>>, %arg8: memref<1x1x128xf32, #tpu.memory_space<vmem>>, %arg9: memref<1x1x128xf32, #tpu.memory_space<vmem>>, %arg10: memref<1x128x256xbf16, #tpu.memory_space<vmem>>, %arg11: memref<1x1x256xf32, #tpu.memory_space<vmem>>, %arg12: memref<1x256x128xbf16, #tpu.memory_space<vmem>>, %arg13: memref<1x1x128xf32, #tpu.memory_space<vmem>>, %arg14: memref<1x1x128xf32, #tpu.memory_space<vmem>>, %arg15: memref<1x1x128xf32, #tpu.memory_space<vmem>>, %arg16: memref<16x128xf32, #tpu.memory_space<vmem>>) attributes {dimension_semantics = [#tpu.dimension_semantics<parallel>, #tpu.dimension_semantics<arbitrary>], iteration_bounds = array<i64: 1, 2>, scalar_prefetch = 0 : i64, scratch_operands = 0 : i64, tpu.core_type = #tpu.core_type<tc>, window_params = [{transform_indices = @transform_0, window_bounds = array<i64: 16, 128>}, {transform_indices = @transform_1, window_bounds = array<i64: 2, 1, 8>}, {transform_indices = @transform_2, window_bounds = array<i64: 1, 128, 384>}, {transform_indices = @transform_3, window_bounds = array<i64: 1, 1, 384>}, {transform_indices = @transform_4, window_bounds = array<i64: 1, 128, 128>}, {transform_indices = @transform_5, window_bounds = array<i64: 1, 1, 128>}, {transform_indices = @transform_6, window_bounds = array<i64: 1, 1, 128>}, {transform_indices = @transform_7, window_bounds = array<i64: 1, 1, 128>}, {transform_indices = @transform_8, window_bounds = array<i64: 1, 128, 256>}, {transform_indices = @transform_9, window_bounds = array<i64: 1, 1, 256>}, {transform_indices = @transform_10, window_bounds = array<i64: 1, 256, 128>}, {transform_indices = @transform_11, window_bounds = array<i64: 1, 1, 128>}, {transform_indices = @transform_12, window_bounds = array<i64: 1, 1, 128>}, {transform_indices = @transform_13, window_bounds = array<i64: 1, 1, 128>}, {transform_indices = @transform_14, window_bounds = array<i64: 16, 128>}]} {
    %c0_i32 = arith.constant 0 : i32
    %0 = arith.cmpi eq, %arg1, %c0_i32 : i32
    %1 = arith.extui %0 : i1 to i32
    %c0_i32_0 = arith.constant 0 : i32
    %2 = arith.cmpi ne, %1, %c0_i32_0 : i32
    scf.if %2 {
      %c0_77 = arith.constant 0 : index
      %c0_78 = arith.constant 0 : index
      %194 = vector.load %arg2[%c0_77, %c0_78] : memref<16x128xf32, #tpu.memory_space<vmem>>, vector<16x128xf32>
      %c0_79 = arith.constant 0 : index
      %c0_80 = arith.constant 0 : index
      %195 = vector.load %arg16[%c0_79, %c0_80] : memref<16x128xf32, #tpu.memory_space<vmem>>, vector<16x128xf32>
      tpu.vector_store %arg16[%c0_79, %c0_80], %194 {strides = array<i32>} : memref<16x128xf32, #tpu.memory_space<vmem>>, vector<16x128xf32>,
    } else {
    }
    %c0 = arith.constant 0 : index
    %c0_1 = arith.constant 0 : index
    %3 = vector.load %arg16[%c0, %c0_1] : memref<16x128xf32, #tpu.memory_space<vmem>>, vector<16x128xf32>
    %4 = arith.truncf %3 : vector<16x128xf32> to vector<16x128xbf16>
    %c0_2 = arith.constant 0 : index
    %c0_3 = arith.constant 0 : index
    %c0_4 = arith.constant 0 : index
    %5 = vector.load %arg4[%c0_2, %c0_3, %c0_4] : memref<1x128x384xbf16, #tpu.memory_space<vmem>>, vector<1x128x384xbf16>
    %6 = vector.shape_cast %5 : vector<1x128x384xbf16> to vector<128x384xbf16>
    %cst = arith.constant dense<0.000000e+00> : vector<16x384xf32>
    %7 = tpu.matmul %4, %6, %cst {dimension_numbers = #tpu.dot_dimension_numbers<[1], [0], [0], [1], [0, 0, 1, 1], [], []>} : vector<16x128xbf16>, vector<128x384xbf16>, vector<16x384xf32> -> vector<16x384xf32>
    %c0_5 = arith.constant 0 : index
    %c0_6 = arith.constant 0 : index
    %c0_7 = arith.constant 0 : index
    %8 = vector.load %arg5[%c0_5, %c0_6, %c0_7] : memref<1x1x384xf32, #tpu.memory_space<vmem>>, vector<1x1x384xf32>
    %9 = vector.shape_cast %8 : vector<1x1x384xf32> to vector<1x384xf32>
    %10 = vector.broadcast %9 : vector<1x384xf32> to vector<16x384xf32>
    %11 = arith.addf %7, %10 : vector<16x384xf32>
    %12 = arith.truncf %11 : vector<16x384xf32> to vector<16x384xbf16>
    %c0_8 = arith.constant 0 : index
    %c0_9 = arith.constant 0 : index
    %c0_10 = arith.constant 0 : index
    %13 = vector.load %arg3[%c0_8, %c0_9, %c0_10] : memref<2x1x8xf32, #tpu.memory_space<vmem>>, vector<2x1x8xf32>
    %14 = vector.shape_cast %13 : vector<2x1x8xf32> to vector<2x1x8xf32>
    %15 = vector.broadcast %14 : vector<2x1x8xf32> to vector<2x8x8xf32>
    %16 = vector.extract_strided_slice %11 {offsets = [0, 0], sizes = [16, 32], strides = [1, 1]} : vector<16x384xf32> to vector<16x32xf32>
    %cst_11 = arith.constant 0.176776692 : f32
    %17 = vector.broadcast %cst_11 : f32 to vector<16x32xf32>
    %18 = arith.mulf %16, %17 : vector<16x32xf32>
    %19 = arith.truncf %18 : vector<16x32xf32> to vector<16x32xbf16>
    %20 = vector.shape_cast %19 : vector<16x32xbf16> to vector<2x8x32xbf16>
    %21 = vector.extract_strided_slice %12 {offsets = [0, 128], sizes = [16, 32], strides = [1, 1]} : vector<16x384xbf16> to vector<16x32xbf16>
    %22 = vector.shape_cast %21 : vector<16x32xbf16> to vector<2x8x32xbf16>
    %23 = vector.extract_strided_slice %12 {offsets = [0, 256], sizes = [16, 32], strides = [1, 1]} : vector<16x384xbf16> to vector<16x32xbf16>
    %24 = vector.shape_cast %23 : vector<16x32xbf16> to vector<2x8x32xbf16>
    "tpu.trace_start"() <{level = 10 : i32, message = "bqd,bkd->bqk"}> : () -> ()
    %cst_12 = arith.constant dense<0.000000e+00> : vector<2x8x8xf32>
    %25 = tpu.matmul %20, %22, %cst_12 {dimension_numbers = #tpu.dot_dimension_numbers<[2], [2], [1], [1], [0, 0, 0, 1, 1, 1], [0], [0]>} : vector<2x8x32xbf16>, vector<2x8x32xbf16>, vector<2x8x8xf32> -> vector<2x8x8xf32>
    "tpu.trace_stop"() : () -> ()
    %26 = arith.addf %25, %15 : vector<2x8x8xf32>
    %cst_13 = arith.constant dense<0xFF800000> : vector<2x8xf32>
    %27 = vector.multi_reduction <maximumf>, %26, %cst_13 [2] : vector<2x8x8xf32> to vector<2x8xf32>
    %28 = vector.shape_cast %27 : vector<2x8xf32> to vector<2x8x1xf32>
    %29 = vector.broadcast %28 : vector<2x8x1xf32> to vector<2x8x8xf32>
    %30 = arith.subf %26, %29 : vector<2x8x8xf32>
    %31 = math.exp %30 : vector<2x8x8xf32>
    %cst_14 = arith.constant dense<0.000000e+00> : vector<2x8xf32>
    %32 = vector.multi_reduction <add>, %31, %cst_14 [2] : vector<2x8x8xf32> to vector<2x8xf32>
    %33 = vector.shape_cast %32 : vector<2x8xf32> to vector<2x8x1xf32>
    %34 = tpu.reciprocal %33 {approx = true} : vector<2x8x1xf32> -> vector<2x8x1xf32>
    %35 = vector.broadcast %34 : vector<2x8x1xf32> to vector<2x8x8xf32>
    %36 = arith.mulf %31, %35 : vector<2x8x8xf32>
    %37 = arith.truncf %36 : vector<2x8x8xf32> to vector<2x8x8xbf16>
    "tpu.trace_start"() <{level = 10 : i32, message = "bqk,bkd->bqd"}> : () -> ()
    %cst_15 = arith.constant dense<0.000000e+00> : vector<2x8x32xf32>
    %38 = tpu.matmul %37, %24, %cst_15 {dimension_numbers = #tpu.dot_dimension_numbers<[2], [1], [1], [2], [0, 0, 0, 1, 1, 2], [0], [0]>} : vector<2x8x8xbf16>, vector<2x8x32xbf16>, vector<2x8x32xf32> -> vector<2x8x32xf32>
    "tpu.trace_stop"() : () -> ()
    %39 = vector.shape_cast %38 : vector<2x8x32xf32> to vector<16x32xf32>
    %40 = vector.extract_strided_slice %11 {offsets = [0, 32], sizes = [16, 32], strides = [1, 1]} : vector<16x384xf32> to vector<16x32xf32>
    %cst_16 = arith.constant 0.176776692 : f32
    %41 = vector.broadcast %cst_16 : f32 to vector<16x32xf32>
    %42 = arith.mulf %40, %41 : vector<16x32xf32>
    %43 = arith.truncf %42 : vector<16x32xf32> to vector<16x32xbf16>
    %44 = vector.shape_cast %43 : vector<16x32xbf16> to vector<2x8x32xbf16>
    %45 = vector.extract_strided_slice %12 {offsets = [0, 160], sizes = [16, 32], strides = [1, 1]} : vector<16x384xbf16> to vector<16x32xbf16>
    %46 = vector.shape_cast %45 : vector<16x32xbf16> to vector<2x8x32xbf16>
    %47 = vector.extract_strided_slice %12 {offsets = [0, 288], sizes = [16, 32], strides = [1, 1]} : vector<16x384xbf16> to vector<16x32xbf16>
    %48 = vector.shape_cast %47 : vector<16x32xbf16> to vector<2x8x32xbf16>
    "tpu.trace_start"() <{level = 10 : i32, message = "bqd,bkd->bqk"}> : () -> ()
    %cst_17 = arith.constant dense<0.000000e+00> : vector<2x8x8xf32>
    %49 = tpu.matmul %44, %46, %cst_17 {dimension_numbers = #tpu.dot_dimension_numbers<[2], [2], [1], [1], [0, 0, 0, 1, 1, 1], [0], [0]>} : vector<2x8x32xbf16>, vector<2x8x32xbf16>, vector<2x8x8xf32> -> vector<2x8x8xf32>
    "tpu.trace_stop"() : () -> ()
    %50 = arith.addf %49, %15 : vector<2x8x8xf32>
    %cst_18 = arith.constant dense<0xFF800000> : vector<2x8xf32>
    %51 = vector.multi_reduction <maximumf>, %50, %cst_18 [2] : vector<2x8x8xf32> to vector<2x8xf32>
    %52 = vector.shape_cast %51 : vector<2x8xf32> to vector<2x8x1xf32>
    %53 = vector.broadcast %52 : vector<2x8x1xf32> to vector<2x8x8xf32>
    %54 = arith.subf %50, %53 : vector<2x8x8xf32>
    %55 = math.exp %54 : vector<2x8x8xf32>
    %cst_19 = arith.constant dense<0.000000e+00> : vector<2x8xf32>
    %56 = vector.multi_reduction <add>, %55, %cst_19 [2] : vector<2x8x8xf32> to vector<2x8xf32>
    %57 = vector.shape_cast %56 : vector<2x8xf32> to vector<2x8x1xf32>
    %58 = tpu.reciprocal %57 {approx = true} : vector<2x8x1xf32> -> vector<2x8x1xf32>
    %59 = vector.broadcast %58 : vector<2x8x1xf32> to vector<2x8x8xf32>
    %60 = arith.mulf %55, %59 : vector<2x8x8xf32>
    %61 = arith.truncf %60 : vector<2x8x8xf32> to vector<2x8x8xbf16>
    "tpu.trace_start"() <{level = 10 : i32, message = "bqk,bkd->bqd"}> : () -> ()
    %cst_20 = arith.constant dense<0.000000e+00> : vector<2x8x32xf32>
    %62 = tpu.matmul %61, %48, %cst_20 {dimension_numbers = #tpu.dot_dimension_numbers<[2], [1], [1], [2], [0, 0, 0, 1, 1, 2], [0], [0]>} : vector<2x8x8xbf16>, vector<2x8x32xbf16>, vector<2x8x32xf32> -> vector<2x8x32xf32>
    "tpu.trace_stop"() : () -> ()
    %63 = vector.shape_cast %62 : vector<2x8x32xf32> to vector<16x32xf32>
    %64 = vector.extract_strided_slice %11 {offsets = [0, 64], sizes = [16, 32], strides = [1, 1]} : vector<16x384xf32> to vector<16x32xf32>
    %cst_21 = arith.constant 0.176776692 : f32
    %65 = vector.broadcast %cst_21 : f32 to vector<16x32xf32>
    %66 = arith.mulf %64, %65 : vector<16x32xf32>
    %67 = arith.truncf %66 : vector<16x32xf32> to vector<16x32xbf16>
    %68 = vector.shape_cast %67 : vector<16x32xbf16> to vector<2x8x32xbf16>
    %69 = vector.extract_strided_slice %12 {offsets = [0, 192], sizes = [16, 32], strides = [1, 1]} : vector<16x384xbf16> to vector<16x32xbf16>
    %70 = vector.shape_cast %69 : vector<16x32xbf16> to vector<2x8x32xbf16>
    %71 = vector.extract_strided_slice %12 {offsets = [0, 320], sizes = [16, 32], strides = [1, 1]} : vector<16x384xbf16> to vector<16x32xbf16>
    %72 = vector.shape_cast %71 : vector<16x32xbf16> to vector<2x8x32xbf16>
    "tpu.trace_start"() <{level = 10 : i32, message = "bqd,bkd->bqk"}> : () -> ()
    %cst_22 = arith.constant dense<0.000000e+00> : vector<2x8x8xf32>
    %73 = tpu.matmul %68, %70, %cst_22 {dimension_numbers = #tpu.dot_dimension_numbers<[2], [2], [1], [1], [0, 0, 0, 1, 1, 1], [0], [0]>} : vector<2x8x32xbf16>, vector<2x8x32xbf16>, vector<2x8x8xf32> -> vector<2x8x8xf32>
    "tpu.trace_stop"() : () -> ()
    %74 = arith.addf %73, %15 : vector<2x8x8xf32>
    %cst_23 = arith.constant dense<0xFF800000> : vector<2x8xf32>
    %75 = vector.multi_reduction <maximumf>, %74, %cst_23 [2] : vector<2x8x8xf32> to vector<2x8xf32>
    %76 = vector.shape_cast %75 : vector<2x8xf32> to vector<2x8x1xf32>
    %77 = vector.broadcast %76 : vector<2x8x1xf32> to vector<2x8x8xf32>
    %78 = arith.subf %74, %77 : vector<2x8x8xf32>
    %79 = math.exp %78 : vector<2x8x8xf32>
    %cst_24 = arith.constant dense<0.000000e+00> : vector<2x8xf32>
    %80 = vector.multi_reduction <add>, %79, %cst_24 [2] : vector<2x8x8xf32> to vector<2x8xf32>
    %81 = vector.shape_cast %80 : vector<2x8xf32> to vector<2x8x1xf32>
    %82 = tpu.reciprocal %81 {approx = true} : vector<2x8x1xf32> -> vector<2x8x1xf32>
    %83 = vector.broadcast %82 : vector<2x8x1xf32> to vector<2x8x8xf32>
    %84 = arith.mulf %79, %83 : vector<2x8x8xf32>
    %85 = arith.truncf %84 : vector<2x8x8xf32> to vector<2x8x8xbf16>
    "tpu.trace_start"() <{level = 10 : i32, message = "bqk,bkd->bqd"}> : () -> ()
    %cst_25 = arith.constant dense<0.000000e+00> : vector<2x8x32xf32>
    %86 = tpu.matmul %85, %72, %cst_25 {dimension_numbers = #tpu.dot_dimension_numbers<[2], [1], [1], [2], [0, 0, 0, 1, 1, 2], [0], [0]>} : vector<2x8x8xbf16>, vector<2x8x32xbf16>, vector<2x8x32xf32> -> vector<2x8x32xf32>
    "tpu.trace_stop"() : () -> ()
    %87 = vector.shape_cast %86 : vector<2x8x32xf32> to vector<16x32xf32>
    %88 = vector.extract_strided_slice %11 {offsets = [0, 96], sizes = [16, 32], strides = [1, 1]} : vector<16x384xf32> to vector<16x32xf32>
    %cst_26 = arith.constant 0.176776692 : f32
    %89 = vector.broadcast %cst_26 : f32 to vector<16x32xf32>
    %90 = arith.mulf %88, %89 : vector<16x32xf32>
    %91 = arith.truncf %90 : vector<16x32xf32> to vector<16x32xbf16>
    %92 = vector.shape_cast %91 : vector<16x32xbf16> to vector<2x8x32xbf16>
    %93 = vector.extract_strided_slice %12 {offsets = [0, 224], sizes = [16, 32], strides = [1, 1]} : vector<16x384xbf16> to vector<16x32xbf16>
    %94 = vector.shape_cast %93 : vector<16x32xbf16> to vector<2x8x32xbf16>
    %95 = vector.extract_strided_slice %12 {offsets = [0, 352], sizes = [16, 32], strides = [1, 1]} : vector<16x384xbf16> to vector<16x32xbf16>
    %96 = vector.shape_cast %95 : vector<16x32xbf16> to vector<2x8x32xbf16>
    "tpu.trace_start"() <{level = 10 : i32, message = "bqd,bkd->bqk"}> : () -> ()
    %cst_27 = arith.constant dense<0.000000e+00> : vector<2x8x8xf32>
    %97 = tpu.matmul %92, %94, %cst_27 {dimension_numbers = #tpu.dot_dimension_numbers<[2], [2], [1], [1], [0, 0, 0, 1, 1, 1], [0], [0]>} : vector<2x8x32xbf16>, vector<2x8x32xbf16>, vector<2x8x8xf32> -> vector<2x8x8xf32>
    "tpu.trace_stop"() : () -> ()
    %98 = arith.addf %97, %15 : vector<2x8x8xf32>
    %cst_28 = arith.constant dense<0xFF800000> : vector<2x8xf32>
    %99 = vector.multi_reduction <maximumf>, %98, %cst_28 [2] : vector<2x8x8xf32> to vector<2x8xf32>
    %100 = vector.shape_cast %99 : vector<2x8xf32> to vector<2x8x1xf32>
    %101 = vector.broadcast %100 : vector<2x8x1xf32> to vector<2x8x8xf32>
    %102 = arith.subf %98, %101 : vector<2x8x8xf32>
    %103 = math.exp %102 : vector<2x8x8xf32>
    %cst_29 = arith.constant dense<0.000000e+00> : vector<2x8xf32>
    %104 = vector.multi_reduction <add>, %103, %cst_29 [2] : vector<2x8x8xf32> to vector<2x8xf32>
    %105 = vector.shape_cast %104 : vector<2x8xf32> to vector<2x8x1xf32>
    %106 = tpu.reciprocal %105 {approx = true} : vector<2x8x1xf32> -> vector<2x8x1xf32>
    %107 = vector.broadcast %106 : vector<2x8x1xf32> to vector<2x8x8xf32>
    %108 = arith.mulf %103, %107 : vector<2x8x8xf32>
    %109 = arith.truncf %108 : vector<2x8x8xf32> to vector<2x8x8xbf16>
    "tpu.trace_start"() <{level = 10 : i32, message = "bqk,bkd->bqd"}> : () -> ()
    %cst_30 = arith.constant dense<0.000000e+00> : vector<2x8x32xf32>
    %110 = tpu.matmul %109, %96, %cst_30 {dimension_numbers = #tpu.dot_dimension_numbers<[2], [1], [1], [2], [0, 0, 0, 1, 1, 2], [0], [0]>} : vector<2x8x8xbf16>, vector<2x8x32xbf16>, vector<2x8x32xf32> -> vector<2x8x32xf32>
    "tpu.trace_stop"() : () -> ()
    %111 = vector.shape_cast %110 : vector<2x8x32xf32> to vector<16x32xf32>
    %112 = tpu.concatenate %39, %63, %87, %111 in 1 : vector<16x32xf32>, vector<16x32xf32>, vector<16x32xf32>, vector<16x32xf32> -> vector<16x128xf32>
    %113 = arith.truncf %112 : vector<16x128xf32> to vector<16x128xbf16>
    %c0_31 = arith.constant 0 : index
    %c0_32 = arith.constant 0 : index
    %c0_33 = arith.constant 0 : index
    %114 = vector.load %arg6[%c0_31, %c0_32, %c0_33] : memref<1x128x128xbf16, #tpu.memory_space<vmem>>, vector<1x128x128xbf16>
    %115 = vector.shape_cast %114 : vector<1x128x128xbf16> to vector<128x128xbf16>
    %cst_34 = arith.constant dense<0.000000e+00> : vector<16x128xf32>
    %116 = tpu.matmul %113, %115, %cst_34 {dimension_numbers = #tpu.dot_dimension_numbers<[1], [0], [0], [1], [0, 0, 1, 1], [], []>} : vector<16x128xbf16>, vector<128x128xbf16>, vector<16x128xf32> -> vector<16x128xf32>
    %c0_35 = arith.constant 0 : index
    %c0_36 = arith.constant 0 : index
    %c0_37 = arith.constant 0 : index
    %117 = vector.load %arg7[%c0_35, %c0_36, %c0_37] : memref<1x1x128xf32, #tpu.memory_space<vmem>>, vector<1x1x128xf32>
    %118 = vector.shape_cast %117 : vector<1x1x128xf32> to vector<1x128xf32>
    %119 = vector.broadcast %118 : vector<1x128xf32> to vector<16x128xf32>
    %120 = arith.addf %116, %119 : vector<16x128xf32>
    %121 = arith.addf %3, %120 : vector<16x128xf32>
    %cst_38 = arith.constant dense<0.000000e+00> : vector<16xf32>
    %122 = vector.multi_reduction <add>, %121, %cst_38 [1] : vector<16x128xf32> to vector<16xf32>
    %123 = vector.shape_cast %122 : vector<16xf32> to vector<16x1xf32>
    %cst_39 = arith.constant 1.280000e+02 : f32
    %124 = vector.broadcast %cst_39 : f32 to vector<16x1xf32>
    %125 = arith.divf %123, %124 : vector<16x1xf32>
    %126 = vector.broadcast %125 : vector<16x1xf32> to vector<16x128xf32>
    %127 = arith.subf %121, %126 : vector<16x128xf32>
    %128 = arith.mulf %127, %127 : vector<16x128xf32>
    %cst_40 = arith.constant dense<0.000000e+00> : vector<16xf32>
    %129 = vector.multi_reduction <add>, %128, %cst_40 [1] : vector<16x128xf32> to vector<16xf32>
    %130 = vector.shape_cast %129 : vector<16xf32> to vector<16x1xf32>
    %cst_41 = arith.constant 1.280000e+02 : f32
    %131 = vector.broadcast %cst_41 : f32 to vector<16x1xf32>
    %132 = arith.divf %130, %131 : vector<16x1xf32>
    %133 = vector.broadcast %125 : vector<16x1xf32> to vector<16x128xf32>
    %134 = arith.subf %121, %133 : vector<16x128xf32>
    %cst_42 = arith.constant 9.99999974E-6 : f32
    %135 = vector.broadcast %cst_42 : f32 to vector<16x1xf32>
    %136 = arith.addf %132, %135 : vector<16x1xf32>
    %137 = math.rsqrt %136 : vector<16x1xf32>
    %138 = vector.broadcast %137 : vector<16x1xf32> to vector<16x128xf32>
    %139 = arith.mulf %134, %138 : vector<16x128xf32>
    %c0_43 = arith.constant 0 : index
    %c0_44 = arith.constant 0 : index
    %c0_45 = arith.constant 0 : index
    %140 = vector.load %arg8[%c0_43, %c0_44, %c0_45] : memref<1x1x128xf32, #tpu.memory_space<vmem>>, vector<1x1x128xf32>
    %141 = vector.shape_cast %140 : vector<1x1x128xf32> to vector<1x128xf32>
    %142 = vector.broadcast %141 : vector<1x128xf32> to vector<16x128xf32>
    %143 = arith.mulf %139, %142 : vector<16x128xf32>
    %c0_46 = arith.constant 0 : index
    %c0_47 = arith.constant 0 : index
    %c0_48 = arith.constant 0 : index
    %144 = vector.load %arg9[%c0_46, %c0_47, %c0_48] : memref<1x1x128xf32, #tpu.memory_space<vmem>>, vector<1x1x128xf32>
    %145 = vector.shape_cast %144 : vector<1x1x128xf32> to vector<1x128xf32>
    %146 = vector.broadcast %145 : vector<1x128xf32> to vector<16x128xf32>
    %147 = arith.addf %143, %146 : vector<16x128xf32>
    %148 = arith.truncf %147 : vector<16x128xf32> to vector<16x128xbf16>
    %c0_49 = arith.constant 0 : index
    %c0_50 = arith.constant 0 : index
    %c0_51 = arith.constant 0 : index
    %149 = vector.load %arg10[%c0_49, %c0_50, %c0_51] : memref<1x128x256xbf16, #tpu.memory_space<vmem>>, vector<1x128x256xbf16>
    %150 = vector.shape_cast %149 : vector<1x128x256xbf16> to vector<128x256xbf16>
    %cst_52 = arith.constant dense<0.000000e+00> : vector<16x256xf32>
    %151 = tpu.matmul %148, %150, %cst_52 {dimension_numbers = #tpu.dot_dimension_numbers<[1], [0], [0], [1], [0, 0, 1, 1], [], []>} : vector<16x128xbf16>, vector<128x256xbf16>, vector<16x256xf32> -> vector<16x256xf32>
    %c0_53 = arith.constant 0 : index
    %c0_54 = arith.constant 0 : index
    %c0_55 = arith.constant 0 : index
    %152 = vector.load %arg11[%c0_53, %c0_54, %c0_55] : memref<1x1x256xf32, #tpu.memory_space<vmem>>, vector<1x1x256xf32>
    %153 = vector.shape_cast %152 : vector<1x1x256xf32> to vector<1x256xf32>
    %154 = vector.broadcast %153 : vector<1x256xf32> to vector<16x256xf32>
    %155 = arith.addf %151, %154 : vector<16x256xf32>
    %cst_56 = arith.constant 0.000000e+00 : f32
    %156 = vector.broadcast %cst_56 : f32 to vector<16x256xf32>
    %157 = arith.maximumf %155, %156 : vector<16x256xf32>
    %158 = arith.truncf %157 : vector<16x256xf32> to vector<16x256xbf16>
    %c0_57 = arith.constant 0 : index
    %c0_58 = arith.constant 0 : index
    %c0_59 = arith.constant 0 : index
    %159 = vector.load %arg12[%c0_57, %c0_58, %c0_59] : memref<1x256x128xbf16, #tpu.memory_space<vmem>>, vector<1x256x128xbf16>
    %160 = vector.shape_cast %159 : vector<1x256x128xbf16> to vector<256x128xbf16>
    %cst_60 = arith.constant dense<0.000000e+00> : vector<16x128xf32>
    %161 = tpu.matmul %158, %160, %cst_60 {dimension_numbers = #tpu.dot_dimension_numbers<[1], [0], [0], [1], [0, 0, 1, 1], [], []>} : vector<16x256xbf16>, vector<256x128xbf16>, vector<16x128xf32> -> vector<16x128xf32>
    %c0_61 = arith.constant 0 : index
    %c0_62 = arith.constant 0 : index
    %c0_63 = arith.constant 0 : index
    %162 = vector.load %arg13[%c0_61, %c0_62, %c0_63] : memref<1x1x128xf32, #tpu.memory_space<vmem>>, vector<1x1x128xf32>
    %163 = vector.shape_cast %162 : vector<1x1x128xf32> to vector<1x128xf32>
    %164 = vector.broadcast %163 : vector<1x128xf32> to vector<16x128xf32>
    %165 = arith.addf %161, %164 : vector<16x128xf32>
    %166 = arith.addf %147, %165 : vector<16x128xf32>
    %cst_64 = arith.constant dense<0.000000e+00> : vector<16xf32>
    %167 = vector.multi_reduction <add>, %166, %cst_64 [1] : vector<16x128xf32> to vector<16xf32>
    %168 = vector.shape_cast %167 : vector<16xf32> to vector<16x1xf32>
    %cst_65 = arith.constant 1.280000e+02 : f32
    %169 = vector.broadcast %cst_65 : f32 to vector<16x1xf32>
    %170 = arith.divf %168, %169 : vector<16x1xf32>
    %171 = vector.broadcast %170 : vector<16x1xf32> to vector<16x128xf32>
    %172 = arith.subf %166, %171 : vector<16x128xf32>
    %173 = arith.mulf %172, %172 : vector<16x128xf32>
    %cst_66 = arith.constant dense<0.000000e+00> : vector<16xf32>
    %174 = vector.multi_reduction <add>, %173, %cst_66 [1] : vector<16x128xf32> to vector<16xf32>
    %175 = vector.shape_cast %174 : vector<16xf32> to vector<16x1xf32>
    %cst_67 = arith.constant 1.280000e+02 : f32
    %176 = vector.broadcast %cst_67 : f32 to vector<16x1xf32>
    %177 = arith.divf %175, %176 : vector<16x1xf32>
    %178 = vector.broadcast %170 : vector<16x1xf32> to vector<16x128xf32>
    %179 = arith.subf %166, %178 : vector<16x128xf32>
    %cst_68 = arith.constant 9.99999974E-6 : f32
    %180 = vector.broadcast %cst_68 : f32 to vector<16x1xf32>
    %181 = arith.addf %177, %180 : vector<16x1xf32>
    %182 = math.rsqrt %181 : vector<16x1xf32>
    %183 = vector.broadcast %182 : vector<16x1xf32> to vector<16x128xf32>
    %184 = arith.mulf %179, %183 : vector<16x128xf32>
    %c0_69 = arith.constant 0 : index
    %c0_70 = arith.constant 0 : index
    %c0_71 = arith.constant 0 : index
    %185 = vector.load %arg14[%c0_69, %c0_70, %c0_71] : memref<1x1x128xf32, #tpu.memory_space<vmem>>, vector<1x1x128xf32>
    %186 = vector.shape_cast %185 : vector<1x1x128xf32> to vector<1x128xf32>
    %187 = vector.broadcast %186 : vector<1x128xf32> to vector<16x128xf32>
    %188 = arith.mulf %184, %187 : vector<16x128xf32>
    %c0_72 = arith.constant 0 : index
    %c0_73 = arith.constant 0 : index
    %c0_74 = arith.constant 0 : index
    %189 = vector.load %arg15[%c0_72, %c0_73, %c0_74] : memref<1x1x128xf32, #tpu.memory_space<vmem>>, vector<1x1x128xf32>
    %190 = vector.shape_cast %189 : vector<1x1x128xf32> to vector<1x128xf32>
    %191 = vector.broadcast %190 : vector<1x128xf32> to vector<16x128xf32>
    %192 = arith.addf %188, %191 : vector<16x128xf32>
    %c0_75 = arith.constant 0 : index
    %c0_76 = arith.constant 0 : index
    %193 = vector.load %arg16[%c0_75, %c0_76] : memref<16x128xf32, #tpu.memory_space<vmem>>, vector<16x128xf32>
    tpu.vector_store %arg16[%c0_75, %c0_76], %192 {strides = array<i32>} : memref<16x128xf32, #tpu.memory_space<vmem>>, vector<16x128xf32>,
    return
  }
  func.func @transform_0(%arg0: i32, %arg1: i32) -> (i32, i32) {
    %c0_i32 = arith.constant 0 : i32
    %c0_i32_0 = arith.constant 0 : i32
    return %arg0, %c0_i32 : i32, i32
  }
  func.func @transform_1(%arg0: i32, %arg1: i32) -> (i32, i32, i32) {
    %c0_i32 = arith.constant 0 : i32
    %c0_i32_0 = arith.constant 0 : i32
    %c0_i32_1 = arith.constant 0 : i32
    return %arg0, %c0_i32, %c0_i32_0 : i32, i32, i32
  }
  func.func @transform_2(%arg0: i32, %arg1: i32) -> (i32, i32, i32) {
    %c0_i32 = arith.constant 0 : i32
    %c0_i32_0 = arith.constant 0 : i32
    %c0_i32_1 = arith.constant 0 : i32
    return %arg1, %c0_i32, %c0_i32_0 : i32, i32, i32
  }
  func.func @transform_3(%arg0: i32, %arg1: i32) -> (i32, i32, i32) {
    %c0_i32 = arith.constant 0 : i32
    %c0_i32_0 = arith.constant 0 : i32
    %c0_i32_1 = arith.constant 0 : i32
    return %arg1, %c0_i32, %c0_i32_0 : i32, i32, i32
  }
  func.func @transform_4(%arg0: i32, %arg1: i32) -> (i32, i32, i32) {
    %c0_i32 = arith.constant 0 : i32
    %c0_i32_0 = arith.constant 0 : i32
    %c0_i32_1 = arith.constant 0 : i32
    return %arg1, %c0_i32, %c0_i32_0 : i32, i32, i32
  }
  func.func @transform_5(%arg0: i32, %arg1: i32) -> (i32, i32, i32) {
    %c0_i32 = arith.constant 0 : i32
    %c0_i32_0 = arith.constant 0 : i32
    %c0_i32_1 = arith.constant 0 : i32
    return %arg1, %c0_i32, %c0_i32_0 : i32, i32, i32
  }
  func.func @transform_6(%arg0: i32, %arg1: i32) -> (i32, i32, i32) {
    %c0_i32 = arith.constant 0 : i32
    %c0_i32_0 = arith.constant 0 : i32
    %c0_i32_1 = arith.constant 0 : i32
    return %arg1, %c0_i32, %c0_i32_0 : i32, i32, i32
  }
  func.func @transform_7(%arg0: i32, %arg1: i32) -> (i32, i32, i32) {
    %c0_i32 = arith.constant 0 : i32
    %c0_i32_0 = arith.constant 0 : i32
    %c0_i32_1 = arith.constant 0 : i32
    return %arg1, %c0_i32, %c0_i32_0 : i32, i32, i32
  }
  func.func @transform_8(%arg0: i32, %arg1: i32) -> (i32, i32, i32) {
    %c0_i32 = arith.constant 0 : i32
    %c0_i32_0 = arith.constant 0 : i32
    %c0_i32_1 = arith.constant 0 : i32
    return %arg1, %c0_i32, %c0_i32_0 : i32, i32, i32
  }
  func.func @transform_9(%arg0: i32, %arg1: i32) -> (i32, i32, i32) {
    %c0_i32 = arith.constant 0 : i32
    %c0_i32_0 = arith.constant 0 : i32
    %c0_i32_1 = arith.constant 0 : i32
    return %arg1, %c0_i32, %c0_i32_0 : i32, i32, i32
  }
  func.func @transform_10(%arg0: i32, %arg1: i32) -> (i32, i32, i32) {
    %c0_i32 = arith.constant 0 : i32
    %c0_i32_0 = arith.constant 0 : i32
    %c0_i32_1 = arith.constant 0 : i32
    return %arg1, %c0_i32, %c0_i32_0 : i32, i32, i32
  }
  func.func @transform_11(%arg0: i32, %arg1: i32) -> (i32, i32, i32) {
    %c0_i32 = arith.constant 0 : i32
    %c0_i32_0 = arith.constant 0 : i32
    %c0_i32_1 = arith.constant 0 : i32
    return %arg1, %c0_i32, %c0_i32_0 : i32, i32, i32
  }
  func.func @transform_12(%arg0: i32, %arg1: i32) -> (i32, i32, i32) {
    %c0_i32 = arith.constant 0 : i32
    %c0_i32_0 = arith.constant 0 : i32
    %c0_i32_1 = arith.constant 0 : i32
    return %arg1, %c0_i32, %c0_i32_0 : i32, i32, i32
  }
  func.func @transform_13(%arg0: i32, %arg1: i32) -> (i32, i32, i32) {
    %c0_i32 = arith.constant 0 : i32
    %c0_i32_0 = arith.constant 0 : i32
    %c0_i32_1 = arith.constant 0 : i32
    return %arg1, %c0_i32, %c0_i32_0 : i32, i32, i32
  }
  func.func @transform_14(%arg0: i32, %arg1: i32) -> (i32, i32) {
    %c0_i32 = arith.constant 0 : i32
    %c0_i32_0 = arith.constant 0 : i32
    return %arg0, %c0_i32 : i32, i32
  }
}

</mosaic_0001>

<llo_original>
// kernel: tpu_custom_call.1
$region0: #{tpu_custom_call.1}
  #allocation0 [shape = 'u32[]', space=smem, size = 0x4, offset = 0x4, fixed_abs, tag = 'smem constant byte address 0x4 - core index']
  #allocation1 [shape = 'u32[144,128]{1,0:T(1,128)}', space=vmem, size = 0x12000, scoped, tag = 'internal scratch']
  %s0 = inlined_call_operand.hbm [shape: f32[16,128], index: 0, kind: input, shape index: {}]
  %s1 = inlined_call_operand.hbm [shape: f32[2,1,8], index: 1, kind: input, shape index: {}]
  %s2 = inlined_call_operand.hbm [shape: bf16[2,128,384], index: 2, kind: input, shape index: {}]
  %s3 = inlined_call_operand.hbm [shape: f32[2,1,384], index: 3, kind: input, shape index: {}]
  %s4 = inlined_call_operand.hbm [shape: bf16[2,128,128], index: 4, kind: input, shape index: {}]
  %s5 = inlined_call_operand.vmem [shape: f32[2,1,128], index: 5, kind: input, shape index: {}]
  %s6 = inlined_call_operand.vmem [shape: f32[2,1,128], index: 6, kind: input, shape index: {}]
  %s7 = inlined_call_operand.vmem [shape: f32[2,1,128], index: 7, kind: input, shape index: {}]
  %s8 = inlined_call_operand.hbm [shape: bf16[2,128,256], index: 8, kind: input, shape index: {}]
  %s9 = inlined_call_operand.vmem [shape: f32[2,1,256], index: 9, kind: input, shape index: {}]
  %s10 = inlined_call_operand.hbm [shape: bf16[2,256,128], index: 10, kind: input, shape index: {}]
  %s11 = inlined_call_operand.vmem [shape: f32[2,1,128], index: 11, kind: input, shape index: {}]
  %s12 = inlined_call_operand.vmem [shape: f32[2,1,128], index: 12, kind: input, shape index: {}]
  %s13 = inlined_call_operand.vmem [shape: f32[2,1,128], index: 13, kind: input, shape index: {}]
  %s14 = inlined_call_operand.hbm [shape: f32[16,128], index: 14, kind: output, shape index: {}]
  %s15 = sld [smem:[#allocation0]]
  $region121: #{tpu_custom_call.1} parent=0
    _
  %s17 = ssub.s32 1, %s15
  %s18 = scalar_select 0, %s17, %s15
  $region1: #{tpu_custom_call.1} parent=0
    #allocation2 [shape = 'u8[8192]{0}', space=vmem, size = 0x2000, scoped, tag = 'input window, operand 0, single buffered']
    #allocation3 [shape = 's32[2]{0}', space=sflag, size = 0x8, scoped, tag = 'scoped memory for tpu_custom_call.1']
    #allocation4 [shape = 's32[2]{0}', space=sflag, size = 0x8, scoped, tag = 'scoped memory for tpu_custom_call.1']
    #allocation5 [shape = 'u8[1024]{0}', space=vmem, size = 0x400, scoped, tag = 'input window, operand 1, single buffered']
    #allocation6 [shape = 's32[1]{0}', space=sflag, size = 0x4, scoped, tag = 'scoped memory for tpu_custom_call.1']
    #allocation7 [shape = 'u8[196608]{0}', space=vmem, size = 0x30000, scoped, tag = 'input window, operand 2']
    #allocation8 [shape = 'u8[3072]{0}', space=vmem, size = 0xc00, scoped, tag = 'input window, operand 3']
    #allocation9 [shape = 'u8[65536]{0}', space=vmem, size = 0x10000, scoped, tag = 'input window, operand 4']
    #allocation10 [shape = 'u8[131072]{0}', space=vmem, size = 0x20000, scoped, tag = 'input window, operand 8']
    #allocation11 [shape = 'u8[131072]{0}', space=vmem, size = 0x20000, scoped, tag = 'input window, operand 10']
    #allocation12 [shape = 'u8[8192]{0}', space=vmem, size = 0x2000, scoped, tag = 'output window, operand 0, single buffered']
    %19 = vsyncpa [#allocation3], 0
    %20 = vsyncpa [#allocation6], 0
    %21 = vsyncpa [#allocation4], 0
    loop: start=0, step=1, limit=4
    $region2: #{tpu_custom_call.1} parent=1 // loop_pre_header
      _
    $region3: #{tpu_custom_call.1} parent=1 // loop_header
      %s23 = sphi 0, %s27
      %p24 = scmp.ge.s32.totalorder %s23, 4
      %s30 = sphi 0, %s42
      %s31 = sphi 0, %s38
      %s32 = sphi 0, %s30
      %s33 = sphi 0, %s31
      %s34 = sphi 0, %s32
      %s35 = sphi 0, %s33
      %s45 = sphi 0, %s47
      %s48 = sphi 0, %s45
      %s49 = sphi 0, %s48
      %s65 = sphi 0, %s49
      %s71 = sphi 0, %s73
      %s74 = sphi 0, %s71
      %s75 = sphi 0, %s74
      %s91 = sphi 0, %s75
      %s97 = sphi 0, %s99
      %s100 = sphi 0, %s97
      %s101 = sphi 0, %s100
      %s117 = sphi 0, %s101
      %s123 = sphi 0, %s125
      %s126 = sphi 0, %s123
      %s127 = sphi 0, %s126
      %s143 = sphi 0, %s127
      %s149 = sphi 0, %s151
      %s152 = sphi 0, %s149
      %s153 = sphi 0, %s152
      %s169 = sphi 0, %s153
      %s175 = sphi 0, %s177
      %s178 = sphi 0, %s175
      %s179 = sphi 0, %s178
      %s195 = sphi 0, %s179
      %s201 = sphi 0, %s203
      %s204 = sphi 0, %s201
      %s205 = sphi 0, %s204
      %s221 = sphi 0, %s205
      %s227 = sphi 0, %s229
      %s230 = sphi 0, %s227
      %s231 = sphi 0, %s230
      %s247 = sphi 0, %s231
      %s253 = sphi 0, %s255
      %s256 = sphi 0, %s253
      %s257 = sphi 0, %s256
      %s273 = sphi 0, %s257
      %s279 = sphi 0, %s281
      %s282 = sphi 0, %s279
      %s283 = sphi 0, %s282
      %s299 = sphi 0, %s283
      %s305 = sphi 0, %s307
      %s308 = sphi 0, %s305
      %s309 = sphi 0, %s308
      %s325 = sphi 0, %s309
      %s331 = sphi 0, %s333
      %s334 = sphi 0, %s331
      %s335 = sphi 0, %s334
      %s351 = sphi 0, %s335
      %s357 = sphi 0, %s359
      %s360 = sphi 0, %s357
      %s361 = sphi 0, %s360
      %s377 = sphi 0, %s361
      %s383 = sphi 0, %s385
      %s386 = sphi 0, %s383
      %s387 = sphi 0, %s386
      %s403 = sphi 0, %s387
      %s409 = sphi 0, %s411
      %s412 = sphi 0, %s409
      %s413 = sphi 0, %s412
      %s429 = sphi 0, %s413
    $region4: #{tpu_custom_call.1} parent=1 // loop_header_branch
      %26 = sbr.rel (%p24) target = $region8
    $region5: #{tpu_custom_call.1} parent=1 // loop_body
      %s28 = ssub.s32 %s23, 1
      %s29 = ssub.s32 %s23, 2
      %s36 = sadd.s32 1, %s31
      %p37 = scmp.ge.s32.totalorder %s36, 2
      %s38 = scalar_select %p37, 0, %s36
      %s39 = sadd.s32 1, %s30
      %s40 = scalar_select %p37, %s39, %s30
      %p41 = scmp.ge.s32.totalorder %s40, 1
      %s42 = scalar_select %p41, 0, %s40
      %s43 = ssub.s32 %s30, %s42
      %p44 = scmp.eq.s32.totalorder %s43, 0
      %s46 = sadd.s32 %s45, 1
      %s47 = scalar_select %p44, %s45, %s46
      %p50 = pneg %p44
      %p51 = scmp.eq.s32.totalorder %s23, 1
      %p52 = por %p50, %p51
      %p53 = scmp.ne.s32.totalorder %s45, %s48
      %p54 = scmp.eq.s32.totalorder %s23, 0
      %p55 = por %p53, %p54
      %p56 = scmp.ne.s32.totalorder %s45, %s48
      %p57 = scmp.eq.s32.totalorder %s28, 1
      %p58 = por %p56, %p57
      %p59 = scmp.ne.s32.totalorder %s48, %s49
      %p60 = scmp.eq.s32.totalorder %s28, 0
      %p61 = por %p59, %p60
      %p62 = scmp.ne.s32.totalorder %s48, %s49
      %p63 = scmp.eq.s32.totalorder %s29, 1
      %p64 = por %p62, %p63
      %p66 = scmp.ne.s32.totalorder %s49, %s65
      %p67 = scmp.eq.s32.totalorder %s29, 0
      %p68 = por %p66, %p67
      %s69 = ssub.s32 %s30, %s42
      %p70 = scmp.eq.s32.totalorder %s69, 0
      %s72 = sadd.s32 %s71, 1
      %s73 = scalar_select %p70, %s71, %s72
      %p76 = pneg %p70
      %p77 = scmp.eq.s32.totalorder %s23, 1
      %p78 = por %p76, %p77
      %p79 = scmp.ne.s32.totalorder %s71, %s74
      %p80 = scmp.eq.s32.totalorder %s23, 0
      %p81 = por %p79, %p80
      %p82 = scmp.ne.s32.totalorder %s71, %s74
      %p83 = scmp.eq.s32.totalorder %s28, 1
      %p84 = por %p82, %p83
      %p85 = scmp.ne.s32.totalorder %s74, %s75
      %p86 = scmp.eq.s32.totalorder %s28, 0
      %p87 = por %p85, %p86
      %p88 = scmp.ne.s32.totalorder %s74, %s75
      %p89 = scmp.eq.s32.totalorder %s29, 1
      %p90 = por %p88, %p89
      %p92 = scmp.ne.s32.totalorder %s75, %s91
      %p93 = scmp.eq.s32.totalorder %s29, 0
      %p94 = por %p92, %p93
      %s95 = ssub.s32 %s31, %s38
      %p96 = scmp.eq.s32.totalorder %s95, 0
      %s98 = sadd.s32 %s97, 1
      %s99 = scalar_select %p96, %s97, %s98
      %p102 = pneg %p96
      %p103 = scmp.eq.s32.totalorder %s23, 1
      %p104 = por %p102, %p103
      %p105 = scmp.ne.s32.totalorder %s97, %s100
      %p106 = scmp.eq.s32.totalorder %s23, 0
      %p107 = por %p105, %p106
      %p108 = scmp.ne.s32.totalorder %s97, %s100
      %p109 = scmp.eq.s32.totalorder %s28, 1
      %p110 = por %p108, %p109
      %p111 = scmp.ne.s32.totalorder %s100, %s101
      %p112 = scmp.eq.s32.totalorder %s28, 0
      %p113 = por %p111, %p112
      %p114 = scmp.ne.s32.totalorder %s100, %s101
      %p115 = scmp.eq.s32.totalorder %s29, 1
      %p116 = por %p114, %p115
      %p118 = scmp.ne.s32.totalorder %s101, %s117
      %p119 = scmp.eq.s32.totalorder %s29, 0
      %p120 = por %p118, %p119
      %s121 = ssub.s32 %s31, %s38
      %p122 = scmp.eq.s32.totalorder %s121, 0
      %s124 = sadd.s32 %s123, 1
      %s125 = scalar_select %p122, %s123, %s124
      %p128 = pneg %p122
      %p129 = scmp.eq.s32.totalorder %s23, 1
      %p130 = por %p128, %p129
      %p131 = scmp.ne.s32.totalorder %s123, %s126
      %p132 = scmp.eq.s32.totalorder %s23, 0
      %p133 = por %p131, %p132
      %p134 = scmp.ne.s32.totalorder %s123, %s126
      %p135 = scmp.eq.s32.totalorder %s28, 1
      %p136 = por %p134, %p135
      %p137 = scmp.ne.s32.totalorder %s126, %s127
      %p138 = scmp.eq.s32.totalorder %s28, 0
      %p139 = por %p137, %p138
      %p140 = scmp.ne.s32.totalorder %s126, %s127
      %p141 = scmp.eq.s32.totalorder %s29, 1
      %p142 = por %p140, %p141
      %p144 = scmp.ne.s32.totalorder %s127, %s143
      %p145 = scmp.eq.s32.totalorder %s29, 0
      %p146 = por %p144, %p145
      %s147 = ssub.s32 %s31, %s38
      %p148 = scmp.eq.s32.totalorder %s147, 0
      %s150 = sadd.s32 %s149, 1
      %s151 = scalar_select %p148, %s149, %s150
      %p154 = pneg %p148
      %p155 = scmp.eq.s32.totalorder %s23, 1
      %p156 = por %p154, %p155
      %p157 = scmp.ne.s32.totalorder %s149, %s152
      %p158 = scmp.eq.s32.totalorder %s23, 0
      %p159 = por %p157, %p158
      %p160 = scmp.ne.s32.totalorder %s149, %s152
      %p161 = scmp.eq.s32.totalorder %s28, 1
      %p162 = por %p160, %p161
      %p163 = scmp.ne.s32.totalorder %s152, %s153
      %p164 = scmp.eq.s32.totalorder %s28, 0
      %p165 = por %p163, %p164
      %p166 = scmp.ne.s32.totalorder %s152, %s153
      %p167 = scmp.eq.s32.totalorder %s29, 1
      %p168 = por %p166, %p167
      %p170 = scmp.ne.s32.totalorder %s153, %s169
      %p171 = scmp.eq.s32.totalorder %s29, 0
      %p172 = por %p170, %p171
      %s173 = ssub.s32 %s31, %s38
      %p174 = scmp.eq.s32.totalorder %s173, 0
      %s176 = sadd.s32 %s175, 1
      %s177 = scalar_select %p174, %s175, %s176
      %p180 = pneg %p174
      %p181 = scmp.eq.s32.totalorder %s23, 1
      %p182 = por %p180, %p181
      %p183 = scmp.ne.s32.totalorder %s175, %s178
      %p184 = scmp.eq.s32.totalorder %s23, 0
      %p185 = por %p183, %p184
      %p186 = scmp.ne.s32.totalorder %s175, %s178
      %p187 = scmp.eq.s32.totalorder %s28, 1
      %p188 = por %p186, %p187
      %p189 = scmp.ne.s32.totalorder %s178, %s179
      %p190 = scmp.eq.s32.totalorder %s28, 0
      %p191 = por %p189, %p190
      %p192 = scmp.ne.s32.totalorder %s178, %s179
      %p193 = scmp.eq.s32.totalorder %s29, 1
      %p194 = por %p192, %p193
      %p196 = scmp.ne.s32.totalorder %s179, %s195
      %p197 = scmp.eq.s32.totalorder %s29, 0
      %p198 = por %p196, %p197
      %s199 = ssub.s32 %s31, %s38
      %p200 = scmp.eq.s32.totalorder %s199, 0
      %s202 = sadd.s32 %s201, 1
      %s203 = scalar_select %p200, %s201, %s202
      %p206 = pneg %p200
      %p207 = scmp.eq.s32.totalorder %s23, 1
      %p208 = por %p206, %p207
      %p209 = scmp.ne.s32.totalorder %s201, %s204
      %p210 = scmp.eq.s32.totalorder %s23, 0
      %p211 = por %p209, %p210
      %p212 = scmp.ne.s32.totalorder %s201, %s204
      %p213 = scmp.eq.s32.totalorder %s28, 1
      %p214 = por %p212, %p213
      %p215 = scmp.ne.s32.totalorder %s204, %s205
      %p216 = scmp.eq.s32.totalorder %s28, 0
      %p217 = por %p215, %p216
      %p218 = scmp.ne.s32.totalorder %s204, %s205
      %p219 = scmp.eq.s32.totalorder %s29, 1
      %p220 = por %p218, %p219
      %p222 = scmp.ne.s32.totalorder %s205, %s221
      %p223 = scmp.eq.s32.totalorder %s29, 0
      %p224 = por %p222, %p223
      %s225 = ssub.s32 %s31, %s38
      %p226 = scmp.eq.s32.totalorder %s225, 0
      %s228 = sadd.s32 %s227, 1
      %s229 = scalar_select %p226, %s227, %s228
      %p232 = pneg %p226
      %p233 = scmp.eq.s32.totalorder %s23, 1
      %p234 = por %p232, %p233
      %p235 = scmp.ne.s32.totalorder %s227, %s230
      %p236 = scmp.eq.s32.totalorder %s23, 0
      %p237 = por %p235, %p236
      %p238 = scmp.ne.s32.totalorder %s227, %s230
      %p239 = scmp.eq.s32.totalorder %s28, 1
      %p240 = por %p238, %p239
      %p241 = scmp.ne.s32.totalorder %s230, %s231
      %p242 = scmp.eq.s32.totalorder %s28, 0
      %p243 = por %p241, %p242
      %p244 = scmp.ne.s32.totalorder %s230, %s231
      %p245 = scmp.eq.s32.totalorder %s29, 1
      %p246 = por %p244, %p245
      %p248 = scmp.ne.s32.totalorder %s231, %s247
      %p249 = scmp.eq.s32.totalorder %s29, 0
      %p250 = por %p248, %p249
      %s251 = ssub.s32 %s31, %s38
      %p252 = scmp.eq.s32.totalorder %s251, 0
      %s254 = sadd.s32 %s253, 1
      %s255 = scalar_select %p252, %s253, %s254
      %p258 = pneg %p252
      %p259 = scmp.eq.s32.totalorder %s23, 1
      %p260 = por %p258, %p259
      %p261 = scmp.ne.s32.totalorder %s253, %s256
      %p262 = scmp.eq.s32.totalorder %s23, 0
      %p263 = por %p261, %p262
      %p264 = scmp.ne.s32.totalorder %s253, %s256
      %p265 = scmp.eq.s32.totalorder %s28, 1
      %p266 = por %p264, %p265
      %p267 = scmp.ne.s32.totalorder %s256, %s257
      %p268 = scmp.eq.s32.totalorder %s28, 0
      %p269 = por %p267, %p268
      %p270 = scmp.ne.s32.totalorder %s256, %s257
      %p271 = scmp.eq.s32.totalorder %s29, 1
      %p272 = por %p270, %p271
      %p274 = scmp.ne.s32.totalorder %s257, %s273
      %p275 = scmp.eq.s32.totalorder %s29, 0
      %p276 = por %p274, %p275
      %s277 = ssub.s32 %s31, %s38
      %p278 = scmp.eq.s32.totalorder %s277, 0
      %s280 = sadd.s32 %s279, 1
      %s281 = scalar_select %p278, %s279, %s280
      %p284 = pneg %p278
      %p285 = scmp.eq.s32.totalorder %s23, 1
      %p286 = por %p284, %p285
      %p287 = scmp.ne.s32.totalorder %s279, %s282
      %p288 = scmp.eq.s32.totalorder %s23, 0
      %p289 = por %p287, %p288
      %p290 = scmp.ne.s32.totalorder %s279, %s282
      %p291 = scmp.eq.s32.totalorder %s28, 1
      %p292 = por %p290, %p291
      %p293 = scmp.ne.s32.totalorder %s282, %s283
      %p294 = scmp.eq.s32.totalorder %s28, 0
      %p295 = por %p293, %p294
      %p296 = scmp.ne.s32.totalorder %s282, %s283
      %p297 = scmp.eq.s32.totalorder %s29, 1
      %p298 = por %p296, %p297
      %p300 = scmp.ne.s32.totalorder %s283, %s299
      %p301 = scmp.eq.s32.totalorder %s29, 0
      %p302 = por %p300, %p301
      %s303 = ssub.s32 %s31, %s38
      %p304 = scmp.eq.s32.totalorder %s303, 0
      %s306 = sadd.s32 %s305, 1
      %s307 = scalar_select %p304, %s305, %s306
      %p310 = pneg %p304
      %p311 = scmp.eq.s32.totalorder %s23, 1
      %p312 = por %p310, %p311
      %p313 = scmp.ne.s32.totalorder %s305, %s308
      %p314 = scmp.eq.s32.totalorder %s23, 0
      %p315 = por %p313, %p314
      %p316 = scmp.ne.s32.totalorder %s305, %s308
      %p317 = scmp.eq.s32.totalorder %s28, 1
      %p318 = por %p316, %p317
      %p319 = scmp.ne.s32.totalorder %s308, %s309
      %p320 = scmp.eq.s32.totalorder %s28, 0
      %p321 = por %p319, %p320
      %p322 = scmp.ne.s32.totalorder %s308, %s309
      %p323 = scmp.eq.s32.totalorder %s29, 1
      %p324 = por %p322, %p323
      %p326 = scmp.ne.s32.totalorder %s309, %s325
      %p327 = scmp.eq.s32.totalorder %s29, 0
      %p328 = por %p326, %p327
      %s329 = ssub.s32 %s31, %s38
      %p330 = scmp.eq.s32.totalorder %s329, 0
      %s332 = sadd.s32 %s331, 1
      %s333 = scalar_select %p330, %s331, %s332
      %p336 = pneg %p330
      %p337 = scmp.eq.s32.totalorder %s23, 1
      %p338 = por %p336, %p337
      %p339 = scmp.ne.s32.totalorder %s331, %s334
      %p340 = scmp.eq.s32.totalorder %s23, 0
      %p341 = por %p339, %p340
      %p342 = scmp.ne.s32.totalorder %s331, %s334
      %p343 = scmp.eq.s32.totalorder %s28, 1
      %p344 = por %p342, %p343
      %p345 = scmp.ne.s32.totalorder %s334, %s335
      %p346 = scmp.eq.s32.totalorder %s28, 0
      %p347 = por %p345, %p346
      %p348 = scmp.ne.s32.totalorder %s334, %s335
      %p349 = scmp.eq.s32.totalorder %s29, 1
      %p350 = por %p348, %p349
      %p352 = scmp.ne.s32.totalorder %s335, %s351
      %p353 = scmp.eq.s32.totalorder %s29, 0
      %p354 = por %p352, %p353
      %s355 = ssub.s32 %s31, %s38
      %p356 = scmp.eq.s32.totalorder %s355, 0
      %s358 = sadd.s32 %s357, 1
      %s359 = scalar_select %p356, %s357, %s358
      %p362 = pneg %p356
      %p363 = scmp.eq.s32.totalorder %s23, 1
      %p364 = por %p362, %p363
      %p365 = scmp.ne.s32.totalorder %s357, %s360
      %p366 = scmp.eq.s32.totalorder %s23, 0
      %p367 = por %p365, %p366
      %p368 = scmp.ne.s32.totalorder %s357, %s360
      %p369 = scmp.eq.s32.totalorder %s28, 1
      %p370 = por %p368, %p369
      %p371 = scmp.ne.s32.totalorder %s360, %s361
      %p372 = scmp.eq.s32.totalorder %s28, 0
      %p373 = por %p371, %p372
      %p374 = scmp.ne.s32.totalorder %s360, %s361
      %p375 = scmp.eq.s32.totalorder %s29, 1
      %p376 = por %p374, %p375
      %p378 = scmp.ne.s32.totalorder %s361, %s377
      %p379 = scmp.eq.s32.totalorder %s29, 0
      %p380 = por %p378, %p379
      %s381 = ssub.s32 %s31, %s38
      %p382 = scmp.eq.s32.totalorder %s381, 0
      %s384 = sadd.s32 %s383, 1
      %s385 = scalar_select %p382, %s383, %s384
      %p388 = pneg %p382
      %p389 = scmp.eq.s32.totalorder %s23, 1
      %p390 = por %p388, %p389
      %p391 = scmp.ne.s32.totalorder %s383, %s386
      %p392 = scmp.eq.s32.totalorder %s23, 0
      %p393 = por %p391, %p392
      %p394 = scmp.ne.s32.totalorder %s383, %s386
      %p395 = scmp.eq.s32.totalorder %s28, 1
      %p396 = por %p394, %p395
      %p397 = scmp.ne.s32.totalorder %s386, %s387
      %p398 = scmp.eq.s32.totalorder %s28, 0
      %p399 = por %p397, %p398
      %p400 = scmp.ne.s32.totalorder %s386, %s387
      %p401 = scmp.eq.s32.totalorder %s29, 1
      %p402 = por %p400, %p401
      %p404 = scmp.ne.s32.totalorder %s387, %s403
      %p405 = scmp.eq.s32.totalorder %s29, 0
      %p406 = por %p404, %p405
      %s407 = ssub.s32 %s30, %s42
      %p408 = scmp.eq.s32.totalorder %s407, 0
      %s410 = sadd.s32 %s409, 1
      %s411 = scalar_select %p408, %s409, %s410
      %p414 = pneg %p408
      %p415 = scmp.eq.s32.totalorder %s23, 1
      %p416 = por %p414, %p415
      %p417 = scmp.ne.s32.totalorder %s409, %s412
      %p418 = scmp.eq.s32.totalorder %s23, 0
      %p419 = por %p417, %p418
      %p420 = scmp.ne.s32.totalorder %s409, %s412
      %p421 = scmp.eq.s32.totalorder %s28, 1
      %p422 = por %p420, %p421
      %p423 = scmp.ne.s32.totalorder %s412, %s413
      %p424 = scmp.eq.s32.totalorder %s28, 0
      %p425 = por %p423, %p424
      %p426 = scmp.ne.s32.totalorder %s412, %s413
      %p427 = scmp.eq.s32.totalorder %s29, 1
      %p428 = por %p426, %p427
      %p430 = scmp.ne.s32.totalorder %s413, %s429
      %p431 = scmp.eq.s32.totalorder %s29, 0
      %p432 = por %p430, %p431
      %p433 = scmp.le.s32.totalorder 1, %s23
      %p434 = scmp.lt.s32.totalorder %s23, 3
      %p435 = pnand %p433, %p434
      %p436 = pneg %p435
      // Predicated region
      $region9: #{tpu_custom_call.1} parent=5 // pred_check
        _
      $region10: #{tpu_custom_call.1} parent=5 // pred_check_branch
        %438 = sbr.rel (%p435) target = $region12
      $region11: #{tpu_custom_call.1} parent=5 // pred_region
        %s439 = ssub.s32 %s23, 1
        // Predicated region
        $region13: #{tpu_custom_call.1} parent=11 // pred_check
          %p440 = pneg %p61
        $region14: #{tpu_custom_call.1} parent=11 // pred_check_branch
          %442 = sbr.rel (%p440) target = $region16
        $region15: #{tpu_custom_call.1} parent=11 // pred_region
          %s443 = smul.u32 2, %s32
          %s445 = ssub.s32 256, 256
          %446 = vsyncadd [#allocation3], %s445
          %s447 = smul.addr %s443, 128
          %s448 = scalar_lea.hbm %s0, %s447
          %s449 = sshll.u32 [#allocation2], 4
          %s450 = int_to_ptr.vmem [resolvable:$true] %s449
          %455 = dma.hbm_to_vmem [thread:$0]  %s448, 256, %s450, [#allocation3], 128, 128, 8
        $region16: #{tpu_custom_call.1} parent=11 // pred_fallthru
          _
        // Predicated region
        $region17: #{tpu_custom_call.1} parent=11 // pred_check
          %p456 = pneg %p87
        $region18: #{tpu_custom_call.1} parent=11 // pred_check_branch
          %458 = sbr.rel (%p456) target = $region20
        $region19: #{tpu_custom_call.1} parent=11 // pred_region
          %s459 = smul.u32 2, %s32
          %s461 = ssub.s32 32, 32
          %462 = vsyncadd [#allocation6], %s461
          %s463 = smul.addr %s459, 16
          %s464 = scalar_lea.hbm %s1, %s463
          %s465 = sshll.u32 [#allocation5], 4
          %s466 = int_to_ptr.vmem [resolvable:$true] %s465
          %471 = dma.hbm_to_vmem [thread:$0]  %s464, 32, %s466, [#allocation6], 16, 16, 1
        $region20: #{tpu_custom_call.1} parent=11 // pred_fallthru
          _
      $region12: #{tpu_custom_call.1} parent=5 // pred_fallthru
        _
      %p472 = scmp.lt.s32.totalorder %s23, 2
      // Predicated region
      $region21: #{tpu_custom_call.1} parent=5 // pred_check
        %p473 = pneg %p472
      $region22: #{tpu_custom_call.1} parent=5 // pred_check_branch
        %475 = sbr.rel (%p473) target = $region24
      $region23: #{tpu_custom_call.1} parent=5 // pred_region
        // Predicated region
        $region25: #{tpu_custom_call.1} parent=23 // pred_check
          %p476 = pneg %p107
        $region26: #{tpu_custom_call.1} parent=23 // pred_check_branch
          %478 = sbr.rel (%p476) target = $region28
        $region27: #{tpu_custom_call.1} parent=23 // pred_region
          %s479 = sand.u32 %s23, 1
          %s480 = scalar_lea.sflag [#allocation3], %s479
          %s481 = sand.u32 %s97, 1
          %s482 = smul.addr %s481, 192
          %s483 = scalar_lea.vmem [#allocation7], %s482
          %s485 = ssub.s32 3072, 3072
          %486 = vsyncadd %s480, %s485
          %s487 = smul.addr %s31, 48
          %s488 = smul.addr %s487, 64
          %s489 = scalar_lea.hbm %s2, %s488
          %s490 = sshll.u32 %s483, 4
          %s491 = int_to_ptr.vmem [resolvable:$true] %s490
          %496 = dma.hbm_to_vmem [thread:$0]  %s489, 3072, %s491, %s480, 192, 192, 12
        $region28: #{tpu_custom_call.1} parent=23 // pred_fallthru
          _
        // Predicated region
        $region29: #{tpu_custom_call.1} parent=23 // pred_check
          %p497 = pneg %p133
        $region30: #{tpu_custom_call.1} parent=23 // pred_check_branch
          %499 = sbr.rel (%p497) target = $region32
        $region31: #{tpu_custom_call.1} parent=23 // pred_region
          %s500 = sand.u32 %s23, 1
          %s501 = scalar_lea.sflag [#allocation3], %s500
          %s502 = sand.u32 %s123, 1
          %s503 = smul.addr %s502, 3
          %s504 = scalar_lea.vmem [#allocation8], %s503
          %s506 = ssub.s32 48, 48
          %507 = vsyncadd %s501, %s506
          %s508 = smul.addr %s31, 3
          %s509 = smul.addr %s508, 16
          %s510 = scalar_lea.hbm %s3, %s509
          %s512 = sshll.u32 %s504, 4
          %s513 = int_to_ptr.vmem [resolvable:$true] %s512
          %515 = dma.hbm_to_vmem [thread:$0]  %s510, 48, %s513, %s501
        $region32: #{tpu_custom_call.1} parent=23 // pred_fallthru
          _
        // Predicated region
        $region33: #{tpu_custom_call.1} parent=23 // pred_check
          %p516 = pneg %p159
        $region34: #{tpu_custom_call.1} parent=23 // pred_check_branch
          %518 = sbr.rel (%p516) target = $region36
        $region35: #{tpu_custom_call.1} parent=23 // pred_region
          %s519 = sand.u32 %s23, 1
          %s520 = scalar_lea.sflag [#allocation3], %s519
          %s521 = sand.u32 %s149, 1
          %s522 = smul.addr %s521, 64
          %s523 = scalar_lea.vmem [#allocation9], %s522
          %s525 = ssub.s32 1024, 1024
          %526 = vsyncadd %s520, %s525
          %s527 = smul.addr %s31, 16
          %s528 = smul.addr %s527, 64
          %s529 = scalar_lea.hbm %s4, %s528
          %s530 = sshll.u32 %s523, 4
          %s531 = int_to_ptr.vmem [resolvable:$true] %s530
          %536 = dma.hbm_to_vmem [thread:$0]  %s529, 1024, %s531, %s520, 64, 64, 4
        $region36: #{tpu_custom_call.1} parent=23 // pred_fallthru
          _
        // Predicated region
        $region37: #{tpu_custom_call.1} parent=23 // pred_check
          %p537 = pneg %p185
        $region38: #{tpu_custom_call.1} parent=23 // pred_check_branch
          %539 = sbr.rel (%p537) target = $region40
        $region39: #{tpu_custom_call.1} parent=23 // pred_region
          %p540 = scmp.lt.s32.totalorder %s31, 1
          %s541 = scalar_select %p540, %s31, 1
          %s542 = scalar_lea.vmem %s5, %s541
        $region40: #{tpu_custom_call.1} parent=23 // pred_fallthru
          _
        // Predicated region
        $region41: #{tpu_custom_call.1} parent=23 // pred_check
          %p543 = pneg %p211
        $region42: #{tpu_custom_call.1} parent=23 // pred_check_branch
          %545 = sbr.rel (%p543) target = $region44
        $region43: #{tpu_custom_call.1} parent=23 // pred_region
          %p546 = scmp.lt.s32.totalorder %s31, 1
          %s547 = scalar_select %p546, %s31, 1
          %s548 = scalar_lea.vmem %s6, %s547
        $region44: #{tpu_custom_call.1} parent=23 // pred_fallthru
          _
        // Predicated region
        $region45: #{tpu_custom_call.1} parent=23 // pred_check
          %p549 = pneg %p237
        $region46: #{tpu_custom_call.1} parent=23 // pred_check_branch
          %551 = sbr.rel (%p549) target = $region48
        $region47: #{tpu_custom_call.1} parent=23 // pred_region
          %p552 = scmp.lt.s32.totalorder %s31, 1
          %s553 = scalar_select %p552, %s31, 1
          %s554 = scalar_lea.vmem %s7, %s553
        $region48: #{tpu_custom_call.1} parent=23 // pred_fallthru
          _
        // Predicated region
        $region49: #{tpu_custom_call.1} parent=23 // pred_check
          %p555 = pneg %p263
        $region50: #{tpu_custom_call.1} parent=23 // pred_check_branch
          %557 = sbr.rel (%p555) target = $region52
        $region51: #{tpu_custom_call.1} parent=23 // pred_region
          %s558 = sand.u32 %s23, 1
          %s559 = scalar_lea.sflag [#allocation3], %s558
          %s560 = sand.u32 %s253, 1
          %s561 = smul.addr %s560, 128
          %s562 = scalar_lea.vmem [#allocation10], %s561
          %s564 = ssub.s32 2048, 2048
          %565 = vsyncadd %s559, %s564
          %s566 = smul.addr %s31, 32
          %s567 = smul.addr %s566, 64
          %s568 = scalar_lea.hbm %s8, %s567
          %s569 = sshll.u32 %s562, 4
          %s570 = int_to_ptr.vmem [resolvable:$true] %s569
          %575 = dma.hbm_to_vmem [thread:$0]  %s568, 2048, %s570, %s559, 128, 128, 8
        $region52: #{tpu_custom_call.1} parent=23 // pred_fallthru
          _
        // Predicated region
        $region53: #{tpu_custom_call.1} parent=23 // pred_check
          %p576 = pneg %p289
        $region54: #{tpu_custom_call.1} parent=23 // pred_check_branch
          %578 = sbr.rel (%p576) target = $region56
        $region55: #{tpu_custom_call.1} parent=23 // pred_region
          %p579 = scmp.lt.s32.totalorder %s31, 1
          %s580 = scalar_select %p579, %s31, 1
          %s581 = smul.addr %s580, 2
          %s582 = scalar_lea.vmem %s9, %s581
        $region56: #{tpu_custom_call.1} parent=23 // pred_fallthru
          _
        // Predicated region
        $region57: #{tpu_custom_call.1} parent=23 // pred_check
          %p583 = pneg %p315
        $region58: #{tpu_custom_call.1} parent=23 // pred_check_branch
          %585 = sbr.rel (%p583) target = $region60
        $region59: #{tpu_custom_call.1} parent=23 // pred_region
          %s586 = sand.u32 %s23, 1
          %s587 = scalar_lea.sflag [#allocation3], %s586
          %s588 = sand.u32 %s305, 1
          %s589 = smul.addr %s588, 128
          %s590 = scalar_lea.vmem [#allocation11], %s589
          %s592 = ssub.s32 2048, 2048
          %593 = vsyncadd %s587, %s592
          %s594 = smul.addr %s31, 32
          %s595 = smul.addr %s594, 64
          %s596 = scalar_lea.hbm %s10, %s595
          %s597 = sshll.u32 %s590, 4
          %s598 = int_to_ptr.vmem [resolvable:$true] %s597
          %603 = dma.hbm_to_vmem [thread:$0]  %s596, 2048, %s598, %s587, 64, 64, 4
        $region60: #{tpu_custom_call.1} parent=23 // pred_fallthru
          _
        // Predicated region
        $region61: #{tpu_custom_call.1} parent=23 // pred_check
          %p604 = pneg %p341
        $region62: #{tpu_custom_call.1} parent=23 // pred_check_branch
          %606 = sbr.rel (%p604) target = $region64
        $region63: #{tpu_custom_call.1} parent=23 // pred_region
          %p607 = scmp.lt.s32.totalorder %s31, 1
          %s608 = scalar_select %p607, %s31, 1
          %s609 = scalar_lea.vmem %s11, %s608
        $region64: #{tpu_custom_call.1} parent=23 // pred_fallthru
          _
        // Predicated region
        $region65: #{tpu_custom_call.1} parent=23 // pred_check
          %p610 = pneg %p367
        $region66: #{tpu_custom_call.1} parent=23 // pred_check_branch
          %612 = sbr.rel (%p610) target = $region68
        $region67: #{tpu_custom_call.1} parent=23 // pred_region
          %p613 = scmp.lt.s32.totalorder %s31, 1
          %s614 = scalar_select %p613, %s31, 1
          %s615 = scalar_lea.vmem %s12, %s614
        $region68: #{tpu_custom_call.1} parent=23 // pred_fallthru
          _
        // Predicated region
        $region69: #{tpu_custom_call.1} parent=23 // pred_check
          %p616 = pneg %p393
        $region70: #{tpu_custom_call.1} parent=23 // pred_check_branch
          %618 = sbr.rel (%p616) target = $region72
        $region71: #{tpu_custom_call.1} parent=23 // pred_region
          %p619 = scmp.lt.s32.totalorder %s31, 1
          %s620 = scalar_select %p619, %s31, 1
          %s621 = scalar_lea.vmem %s13, %s620
        $region72: #{tpu_custom_call.1} parent=23 // pred_fallthru
          _
      $region24: #{tpu_custom_call.1} parent=5 // pred_fallthru
        _
      %p622 = scmp.le.s32.totalorder 1, %s23
      %p623 = scmp.lt.s32.totalorder %s23, 3
      %p624 = pnand %p622, %p623
      %p625 = pneg %p624
      // Predicated region
      $region73: #{tpu_custom_call.1} parent=5 // pred_check
        _
      $region74: #{tpu_custom_call.1} parent=5 // pred_check_branch
        %627 = sbr.rel (%p624) target = $region76
      $region75: #{tpu_custom_call.1} parent=5 // pred_region
        %s628 = ssub.s32 %s23, 1
        // Predicated region
        $region77: #{tpu_custom_call.1} parent=75 // pred_check
          %p629 = pneg %p61
        $region78: #{tpu_custom_call.1} parent=75 // pred_check_branch
          %631 = sbr.rel (%p629) target = $region80
        $region79: #{tpu_custom_call.1} parent=75 // pred_region
          %632 = dma.done [#allocation3], 256
        $region80: #{tpu_custom_call.1} parent=75 // pred_fallthru
          _
        // Predicated region
        $region81: #{tpu_custom_call.1} parent=75 // pred_check
          %p633 = pneg %p87
        $region82: #{tpu_custom_call.1} parent=75 // pred_check_branch
          %635 = sbr.rel (%p633) target = $region84
        $region83: #{tpu_custom_call.1} parent=75 // pred_region
          %636 = dma.done [#allocation6], 32
        $region84: #{tpu_custom_call.1} parent=75 // pred_fallthru
          _
        %s637 = sand.u32 %s28, 1
        %s638 = scalar_lea.sflag [#allocation3], %s637
        %s639 = sand.u32 %s100, 1
        %s640 = smul.addr %s639, 192
        %s641 = scalar_lea.vmem [#allocation7], %s640
        // Predicated region
        $region85: #{tpu_custom_call.1} parent=75 // pred_check
          %p642 = pneg %p113
        $region86: #{tpu_custom_call.1} parent=75 // pred_check_branch
          %644 = sbr.rel (%p642) target = $region88
        $region87: #{tpu_custom_call.1} parent=75 // pred_region
          %645 = dma.done %s638, 3072
        $region88: #{tpu_custom_call.1} parent=75 // pred_fallthru
          _
        %s646 = sand.u32 %s28, 1
        %s647 = scalar_lea.sflag [#allocation3], %s646
        %s648 = sand.u32 %s126, 1
        %s649 = smul.addr %s648, 3
        %s650 = scalar_lea.vmem [#allocation8], %s649
        // Predicated region
        $region89: #{tpu_custom_call.1} parent=75 // pred_check
          %p651 = pneg %p139
        $region90: #{tpu_custom_call.1} parent=75 // pred_check_branch
          %653 = sbr.rel (%p651) target = $region92
        $region91: #{tpu_custom_call.1} parent=75 // pred_region
          %654 = dma.done %s647, 48
        $region92: #{tpu_custom_call.1} parent=75 // pred_fallthru
          _
        %s655 = sand.u32 %s28, 1
        %s656 = scalar_lea.sflag [#allocation3], %s655
        %s657 = sand.u32 %s152, 1
        %s658 = smul.addr %s657, 64
        %s659 = scalar_lea.vmem [#allocation9], %s658
        // Predicated region
        $region93: #{tpu_custom_call.1} parent=75 // pred_check
          %p660 = pneg %p165
        $region94: #{tpu_custom_call.1} parent=75 // pred_check_branch
          %662 = sbr.rel (%p660) target = $region96
        $region95: #{tpu_custom_call.1} parent=75 // pred_region
          %663 = dma.done %s656, 1024
        $region96: #{tpu_custom_call.1} parent=75 // pred_fallthru
          _
        %s664 = sand.u32 %s28, 1
        %s665 = scalar_lea.sflag [#allocation3], %s664
        %s666 = sand.u32 %s256, 1
        %s667 = smul.addr %s666, 128
        %s668 = scalar_lea.vmem [#allocation10], %s667
        // Predicated region
        $region97: #{tpu_custom_call.1} parent=75 // pred_check
          %p669 = pneg %p269
        $region98: #{tpu_custom_call.1} parent=75 // pred_check_branch
          %671 = sbr.rel (%p669) target = $region100
        $region99: #{tpu_custom_call.1} parent=75 // pred_region
          %672 = dma.done %s665, 2048
        $region100: #{tpu_custom_call.1} parent=75 // pred_fallthru
          _
        %s673 = sand.u32 %s28, 1
        %s674 = scalar_lea.sflag [#allocation3], %s673
        %s675 = sand.u32 %s308, 1
        %s676 = smul.addr %s675, 128
        %s677 = scalar_lea.vmem [#allocation11], %s676
        // Predicated region
        $region101: #{tpu_custom_call.1} parent=75 // pred_check
          %p678 = pneg %p321
        $region102: #{tpu_custom_call.1} parent=75 // pred_check_branch
          %680 = sbr.rel (%p678) target = $region104
        $region103: #{tpu_custom_call.1} parent=75 // pred_region
          %681 = dma.done %s674, 2048
        $region104: #{tpu_custom_call.1} parent=75 // pred_fallthru
          _
        %p682 = pneg %p61
        %p683 = pneg %p58
        %p684 = pneg %p87
        %p685 = pneg %p84
        %s686 = sand.u32 %s28, 1
        %s687 = scalar_lea.sflag [#allocation3], %s686
        %s688 = sand.u32 %s100, 1
        %s689 = smul.addr %s688, 192
        %s690 = scalar_lea.vmem [#allocation7], %s689
        %p691 = pneg %p113
        %p692 = pneg %p110
        %s693 = sand.u32 %s28, 1
        %s694 = scalar_lea.sflag [#allocation3], %s693
        %s695 = sand.u32 %s126, 1
        %s696 = smul.addr %s695, 3
        %s697 = scalar_lea.vmem [#allocation8], %s696
        %p698 = pneg %p139
        %p699 = pneg %p136
        %s700 = sand.u32 %s28, 1
        %s701 = scalar_lea.sflag [#allocation3], %s700
        %s702 = sand.u32 %s152, 1
        %s703 = smul.addr %s702, 64
        %s704 = scalar_lea.vmem [#allocation9], %s703
        %p705 = pneg %p165
        %p706 = pneg %p162
        %p707 = scmp.lt.s32.totalorder %s33, 1
        %s708 = scalar_select %p707, %s33, 1
        %s709 = scalar_lea.vmem %s5, %s708
        %p710 = pneg %p191
        %p711 = pneg %p188
        %p712 = scmp.lt.s32.totalorder %s33, 1
        %s713 = scalar_select %p712, %s33, 1
        %s714 = scalar_lea.vmem %s6, %s713
        %p715 = pneg %p217
        %p716 = pneg %p214
        %p717 = scmp.lt.s32.totalorder %s33, 1
        %s718 = scalar_select %p717, %s33, 1
        %s719 = scalar_lea.vmem %s7, %s718
        %p720 = pneg %p243
        %p721 = pneg %p240
        %s722 = sand.u32 %s28, 1
        %s723 = scalar_lea.sflag [#allocation3], %s722
        %s724 = sand.u32 %s256, 1
        %s725 = smul.addr %s724, 128
        %s726 = scalar_lea.vmem [#allocation10], %s725
        %p727 = pneg %p269
        %p728 = pneg %p266
        %p729 = scmp.lt.s32.totalorder %s33, 1
        %s730 = scalar_select %p729, %s33, 1
        %s731 = smul.addr %s730, 2
        %s732 = scalar_lea.vmem %s9, %s731
        %p733 = pneg %p295
        %p734 = pneg %p292
        %s735 = sand.u32 %s28, 1
        %s736 = scalar_lea.sflag [#allocation3], %s735
        %s737 = sand.u32 %s308, 1
        %s738 = smul.addr %s737, 128
        %s739 = scalar_lea.vmem [#allocation11], %s738
        %p740 = pneg %p321
        %p741 = pneg %p318
        %p742 = scmp.lt.s32.totalorder %s33, 1
        %s743 = scalar_select %p742, %s33, 1
        %s744 = scalar_lea.vmem %s11, %s743
        %p745 = pneg %p347
        %p746 = pneg %p344
        %p747 = scmp.lt.s32.totalorder %s33, 1
        %s748 = scalar_select %p747, %s33, 1
        %s749 = scalar_lea.vmem %s12, %s748
        %p750 = pneg %p373
        %p751 = pneg %p370
        %p752 = scmp.lt.s32.totalorder %s33, 1
        %s753 = scalar_select %p752, %s33, 1
        %s754 = scalar_lea.vmem %s13, %s753
        %p755 = pneg %p399
        %p756 = pneg %p396
        %p757 = pneg %p425
        %p758 = pneg %p422
        %s759 = smul.u32 2, %s32
        %s760 = smul.u32 2, %s32
        %p761 = scmp.lt.s32.totalorder %s33, 1
        %s762 = scalar_select %p761, %s33, 1
        %s763 = scalar_lea.vmem %s5, %s762
        %p764 = scmp.lt.s32.totalorder %s33, 1
        %s765 = scalar_select %p764, %s33, 1
        %s766 = scalar_lea.vmem %s6, %s765
        %p767 = scmp.lt.s32.totalorder %s33, 1
        %s768 = scalar_select %p767, %s33, 1
        %s769 = scalar_lea.vmem %s7, %s768
        %p770 = scmp.lt.s32.totalorder %s33, 1
        %s771 = scalar_select %p770, %s33, 1
        %s772 = smul.addr %s771, 2
        %s773 = scalar_lea.vmem %s9, %s772
        %p774 = scmp.lt.s32.totalorder %s33, 1
        %s775 = scalar_select %p774, %s33, 1
        %s776 = scalar_lea.vmem %s11, %s775
        %p777 = scmp.lt.s32.totalorder %s33, 1
        %s778 = scalar_select %p777, %s33, 1
        %s779 = scalar_lea.vmem %s12, %s778
        %p780 = scmp.lt.s32.totalorder %s33, 1
        %s781 = scalar_select %p780, %s33, 1
        %s782 = scalar_lea.vmem %s13, %s781
        %s783 = smul.u32 2, %s32
        %p785 = scmp.eq.s32.totalorder %s33, 0
        // Predicated region
        $region105: #{tpu_custom_call.1} parent=75 // pred_check
          %p786 = pneg %p785
        $region106: #{tpu_custom_call.1} parent=75 // pred_check_branch
          %788 = sbr.rel (%p786) target = $region108
        $region107: #{tpu_custom_call.1} parent=75 // pred_region
          %v789 = vld [vmem:[#allocation2] sm:$0xff]
          %v790 = vld [vmem:[#allocation2 + $0x8] sm:$0xff]
          %791 = vst [vmem:[#allocation12] sm:$0xff] %v789
          %792 = vst [vmem:[#allocation12 + $0x8] sm:$0xff] %v790
        $region108: #{tpu_custom_call.1} parent=75 // pred_fallthru
          _
        %v793 = vld [vmem:[#allocation12] sm:$0xff]
        %v794 = vld [vmem:[#allocation12 + $0x8] sm:$0xff]
        %v795 = vpack.c.bf16 %v794, %v793
        %v796 = vld [vmem:[%s641] sm:$0xff]
        %v797 = vld [vmem:[%s641 + $0x8] sm:$0xf]
        %v798 = vld [vmem:[%s641 + $0xc] sm:$0xff]
        %v799 = vld [vmem:[%s641 + $0x14] sm:$0xf]
        %v800 = vld [vmem:[%s641 + $0x18] sm:$0xff]
        %v801 = vld [vmem:[%s641 + $0x20] sm:$0xf]
        %v802 = vld [vmem:[%s641 + $0x24] sm:$0xff]
        %v803 = vld [vmem:[%s641 + $0x2c] sm:$0xf]
        %v804 = vld [vmem:[%s641 + $0x30] sm:$0xff]
        %v805 = vld [vmem:[%s641 + $0x38] sm:$0xf]
        %v806 = vld [vmem:[%s641 + $0x3c] sm:$0xff]
        %v807 = vld [vmem:[%s641 + $0x44] sm:$0xf]
        %v808 = vld [vmem:[%s641 + $0x48] sm:$0xff]
        %v809 = vld [vmem:[%s641 + $0x50] sm:$0xf]
        %v810 = vld [vmem:[%s641 + $0x54] sm:$0xff]
        %v811 = vld [vmem:[%s641 + $0x5c] sm:$0xf]
        %v812 = vld [vmem:[%s641 + $0x60] sm:$0xff]
        %v813 = vld [vmem:[%s641 + $0x68] sm:$0xf]
        %v814 = vld [vmem:[%s641 + $0x6c] sm:$0xff]
        %v815 = vld [vmem:[%s641 + $0x74] sm:$0xf]
        %v816 = vld [vmem:[%s641 + $0x78] sm:$0xff]
        %v817 = vld [vmem:[%s641 + $0x80] sm:$0xf]
        %v818 = vld [vmem:[%s641 + $0x84] sm:$0xff]
        %v819 = vld [vmem:[%s641 + $0x8c] sm:$0xf]
        %v820 = vld [vmem:[%s641 + $0x90] sm:$0xff]
        %v821 = vld [vmem:[%s641 + $0x98] sm:$0xf]
        %v822 = vld [vmem:[%s641 + $0x9c] sm:$0xff]
        %v823 = vld [vmem:[%s641 + $0xa4] sm:$0xf]
        %v824 = vld [vmem:[%s641 + $0xa8] sm:$0xff]
        %v825 = vld [vmem:[%s641 + $0xb0] sm:$0xf]
        %v826 = vld [vmem:[%s641 + $0xb4] sm:$0xff]
        %v827 = vld [vmem:[%s641 + $0xbc] sm:$0xf]
        %v828 = vld [vmem:[%s650] sm:$0x7]
        %v830 = vlaneseq
        %v831 = vshrl.u32 %v830, 7
        %v832 = vsub.s32 0, %v831
        %v833 = vrot.slane %v828, %v832
        %v834 = vlaneseq
        %v835 = vshrl.u32 %v834, 7
        %v836 = vsub.s32 1, %v835
        %v837 = vrot.slane %v828, %v836
        %v838 = vlaneseq
        %v839 = vshrl.u32 %v838, 7
        %v840 = vsub.s32 2, %v839
        %v841 = vrot.slane %v828, %v840
        %v877 = vunpack.c.l.b16 %v796
        %v878 = vunpack.c.h.b16 %v796
        %v879 = vunpack.c.l.b16 %v797
        %v880 = vunpack.c.l.b16 %v798
        %v881 = vunpack.c.h.b16 %v798
        %v882 = vunpack.c.l.b16 %v799
        %v883 = vunpack.c.l.b16 %v800
        %v884 = vunpack.c.h.b16 %v800
        %v885 = vunpack.c.l.b16 %v801
        %v886 = vunpack.c.l.b16 %v802
        %v887 = vunpack.c.h.b16 %v802
        %v888 = vunpack.c.l.b16 %v803
        %v889 = vunpack.c.l.b16 %v804
        %v890 = vunpack.c.h.b16 %v804
        %v891 = vunpack.c.l.b16 %v805
        %v892 = vunpack.c.l.b16 %v806
        %v893 = vunpack.c.h.b16 %v806
        %v894 = vunpack.c.l.b16 %v807
        %v895 = vunpack.c.l.b16 %v808
        %v896 = vunpack.c.h.b16 %v808
        %v897 = vunpack.c.l.b16 %v809
        %v898 = vunpack.c.l.b16 %v810
        %v899 = vunpack.c.h.b16 %v810
        %v900 = vunpack.c.l.b16 %v811
        %v901 = vunpack.c.l.b16 %v812
        %v902 = vunpack.c.h.b16 %v812
        %v903 = vunpack.c.l.b16 %v813
        %v904 = vunpack.c.l.b16 %v814
        %v905 = vunpack.c.h.b16 %v814
        %v906 = vunpack.c.l.b16 %v815
        %v907 = vunpack.c.l.b16 %v816
        %v908 = vunpack.c.h.b16 %v816
        %v909 = vunpack.c.l.b16 %v817
        %v910 = vunpack.c.l.b16 %v818
        %v911 = vunpack.c.h.b16 %v818
        %v912 = vunpack.c.l.b16 %v819
        %v913 = vunpack.c.l.b16 %v820
        %v914 = vunpack.c.h.b16 %v820
        %v915 = vunpack.c.l.b16 %v821
        %v916 = vunpack.c.l.b16 %v822
        %v917 = vunpack.c.h.b16 %v822
        %v918 = vunpack.c.l.b16 %v823
        %v919 = vunpack.c.l.b16 %v824
        %v920 = vunpack.c.h.b16 %v824
        %v921 = vunpack.c.l.b16 %v825
        %v922 = vunpack.c.l.b16 %v826
        %v923 = vunpack.c.h.b16 %v826
        %v924 = vunpack.c.l.b16 %v827
        %v925 = vpack.c.b16 %v880, %v877
        %v926 = vpack.c.b16 %v881, %v878
        %v927 = vpack.c.b16 %v882, %v879
        %v928 = vpack.c.b16 %v886, %v883
        %v929 = vpack.c.b16 %v887, %v884
        %v930 = vpack.c.b16 %v888, %v885
        %v931 = vpack.c.b16 %v892, %v889
        %v932 = vpack.c.b16 %v893, %v890
        %v933 = vpack.c.b16 %v894, %v891
        %v934 = vpack.c.b16 %v898, %v895
        %v935 = vpack.c.b16 %v899, %v896
        %v936 = vpack.c.b16 %v900, %v897
        %v937 = vpack.c.b16 %v904, %v901
        %v938 = vpack.c.b16 %v905, %v902
        %v939 = vpack.c.b16 %v906, %v903
        %v940 = vpack.c.b16 %v910, %v907
        %v941 = vpack.c.b16 %v911, %v908
        %v942 = vpack.c.b16 %v912, %v909
        %v943 = vpack.c.b16 %v916, %v913
        %v944 = vpack.c.b16 %v917, %v914
        %v945 = vpack.c.b16 %v918, %v915
        %v946 = vpack.c.b16 %v922, %v919
        %v947 = vpack.c.b16 %v923, %v920
        %v948 = vpack.c.b16 %v924, %v921
        %973 = vmatprep.subr.bf16.mxu0 %v947
        %974 = vmatpush1.bf16.msra.mxu0 %v946
        %975 = vmatprep.subr.bf16.mxu0 %v944
        %976 = vmatpush1.bf16.msra.mxu0 %v943
        %977 = vmatprep.subr.bf16.mxu0 %v941
        %978 = vmatpush1.bf16.msra.mxu0 %v940
        %979 = vmatprep.subr.bf16.mxu0 %v938
        %980 = vmatpush1.bf16.msra.mxu0 %v937
        %981 = vmatprep.subr.bf16.mxu0 %v935
        %982 = vmatpush1.bf16.msra.mxu0 %v934
        %983 = vmatprep.subr.bf16.mxu0 %v932
        %984 = vmatpush1.bf16.msra.mxu0 %v931
        %985 = vmatprep.subr.bf16.mxu0 %v929
        %986 = vmatpush1.bf16.msra.mxu0 %v928
        %987 = vmatprep.subr.bf16.mxu0 %v926
        %988 = vmatpush1.bf16.msra.mxu0 %v925
        %989 = vmatprep.subr.bf16.mxu0 0
        %990 = vmatpush2.bf16.msra.mxu0 0
        %991 = vmatprep.subr.bf16.mxu0 0
        %992 = vmatpush2.bf16.msra.mxu0 0
        %993 = vmatprep.subr.bf16.mxu0 0
        %994 = vmatpush2.bf16.msra.mxu0 0
        %995 = vmatprep.subr.bf16.mxu0 0
        %996 = vmatpush2.bf16.msra.mxu0 0
        %997 = vmatprep.subr.bf16.mxu0 0
        %998 = vmatpush2.bf16.msra.mxu0 0
        %999 = vmatprep.subr.bf16.mxu0 0
        %1000 = vmatpush2.bf16.msra.mxu0 0
        %1001 = vmatprep.subr.bf16.mxu0 0
        %1002 = vmatpush2.bf16.msra.mxu0 0
        %1003 = vmatprep.subr.bf16.mxu0 0
        %1004 = vmatpush2.bf16.msra.mxu0 0
        %1005 = vmatprep.mubr.bf16.mxu0 0
        %1006 = vmatmul.mubr.bf16.gmra.mxu0 %v795
        %v1007 = vpop.f32.mrf.mxu0
        %v1008 = vadd.f32 %v833, %v1007
        %v1009 = vpop.f32.mrf.mxu0
        %v1010 = vadd.f32 %v837, %v1009
        %v1011 = vpop.f32.mrf.mxu0
        %v1012 = vadd.f32 %v833, %v1011
        %v1013 = vpop.f32.mrf.mxu0
        %v1014 = vadd.f32 %v837, %v1013
        %1015 = vdwg.mxu0
        %1016 = vmatprep.subr.bf16.mxu0 0
        %1017 = vmatpush1.bf16.msra.mxu0 %v948
        %1018 = vmatprep.subr.bf16.mxu0 0
        %1019 = vmatpush1.bf16.msra.mxu0 %v945
        %1020 = vmatprep.subr.bf16.mxu0 0
        %1021 = vmatpush1.bf16.msra.mxu0 %v942
        %1022 = vmatprep.subr.bf16.mxu0 0
        %1023 = vmatpush1.bf16.msra.mxu0 %v939
        %1024 = vmatprep.subr.bf16.mxu0 0
        %1025 = vmatpush1.bf16.msra.mxu0 %v936
        %1026 = vmatprep.subr.bf16.mxu0 0
        %1027 = vmatpush1.bf16.msra.mxu0 %v933
        %1028 = vmatprep.subr.bf16.mxu0 0
        %1029 = vmatpush1.bf16.msra.mxu0 %v930
        %1030 = vmatprep.subr.bf16.mxu0 0
        %1031 = vmatpush1.bf16.msra.mxu0 %v927
        %1032 = vmatprep.subr.bf16.mxu0 0
        %1033 = vmatpush2.bf16.msra.mxu0 0
        %1034 = vmatprep.subr.bf16.mxu0 0
        %1035 = vmatpush2.bf16.msra.mxu0 0
        %1036 = vmatprep.subr.bf16.mxu0 0
        %1037 = vmatpush2.bf16.msra.mxu0 0
        %1038 = vmatprep.subr.bf16.mxu0 0
        %1039 = vmatpush2.bf16.msra.mxu0 0
        %1040 = vmatprep.subr.bf16.mxu0 0
        %1041 = vmatpush2.bf16.msra.mxu0 0
        %1042 = vmatprep.subr.bf16.mxu0 0
        %1043 = vmatpush2.bf16.msra.mxu0 0
        %1044 = vmatprep.subr.bf16.mxu0 0
        %1045 = vmatpush2.bf16.msra.mxu0 0
        %1046 = vmatprep.subr.bf16.mxu0 0
        %1047 = vmatpush2.bf16.msra.mxu0 0
        %1048 = vmatprep.mubr.bf16.mxu0 0
        %1049 = vmatmul.mubr.bf16.gmra.mxu0 %v795
        %v1050 = vpop.f32.mrf.mxu0
        %v1051 = vadd.f32 %v841, %v1050
        %v1052 = vpop.f32.mrf.mxu0
        %v1053 = vpop.f32.mrf.mxu0
        %v1054 = vadd.f32 %v841, %v1053
        %v1055 = vpop.f32.mrf.mxu0
        %1056 = vdwg.mxu0
        %v1057 = vpack.c.bf16 %v1014, %v1010
        %v1058 = vpack.c.bf16 %v1054, %v1051
        %v1059 = vld [vmem:[#allocation5] sm:$0x1]
        %v1060 = vld [vmem:[#allocation5 + $0x1] sm:$0x1]
        %v1063 = vlaneseq
        %v1064 = vshrl.u32 %v1063, 7
        %v1065 = vsub.s32 0, %v1064
        %v1066 = vrot.slane %v1059, %v1065
        %v1067 = vlaneseq
        %v1068 = vshrl.u32 %v1067, 7
        %v1069 = vsub.s32 0, %v1068
        %v1070 = vrot.slane %v1060, %v1069
        %v1073 = vmul.f32 %v1008, 0.17677669
        %v1074 = vmul.f32 %v1012, 0.17677669
        %v1075 = vpack.c.bf16 %v1074, %v1073
        %v1077 = vunpack.c.l.b16 %v1075
        %v1078 = vunpack.c.h.b16 %v1075
        %v1079 = vpack.c.b16 %v1077, %v1077
        %v1080 = vpack.c.b16 %v1078, %v1078
        %v1082 = vunpack.c.l.b16 %v1057
        %v1083 = vunpack.c.h.b16 %v1057
        %v1084 = vpack.c.b16 %v1082, %v1082
        %v1085 = vpack.c.b16 %v1083, %v1083
        %v1087 = vunpack.c.l.b16 %v1058
        %v1088 = vunpack.c.h.b16 %v1058
        %v1089 = vpack.c.b16 %v1087, %v1087
        %v1090 = vpack.c.b16 %v1088, %v1088
        %vm1091 = vcmask 261120
        %v1093 = vsel %vm1091, %v1079, 0
        %v1096 = vsel %vm1091, %v1084, 0
        %1098 = vmatprep.subr.bf16.mxu0 0
        %1099 = vmatpush1.bf16.xpose.msra.mxu0 0
        %1100 = vmatprep.subr.bf16.mxu0 0
        %1101 = vmatpush1.bf16.xpose.msra.mxu0 0
        %1102 = vmatprep.subr.bf16.mxu0 0
        %1103 = vmatpush1.bf16.xpose.msra.mxu0 0
        %1104 = vmatprep.subr.bf16.mxu0 0
        %1105 = vmatpush1.bf16.xpose.msra.mxu0 0
        %1106 = vmatprep.subr.bf16.mxu0 0
        %1107 = vmatpush1.bf16.xpose.msra.mxu0 0
        %1108 = vmatprep.subr.bf16.mxu0 0
        %1109 = vmatpush1.bf16.xpose.msra.mxu0 0
        %1110 = vmatprep.subr.bf16.mxu0 0
        %1111 = vmatpush1.bf16.xpose.msra.mxu0 0
        %1112 = vmatprep.subr.bf16.mxu0 0
        %1113 = vmatpush1.bf16.xpose.msra.mxu0 %v1096
        %1114 = vmatprep.subr.bf16.mxu0 0
        %1115 = vmatpush2.bf16.xpose.msra.mxu0 0
        %1116 = vmatprep.subr.bf16.mxu0 0
        %1117 = vmatpush2.bf16.xpose.msra.mxu0 0
        %1118 = vmatprep.subr.bf16.mxu0 0
        %1119 = vmatpush2.bf16.xpose.msra.mxu0 0
        %1120 = vmatprep.subr.bf16.mxu0 0
        %1121 = vmatpush2.bf16.xpose.msra.mxu0 0
        %1122 = vmatprep.subr.bf16.mxu0 0
        %1123 = vmatpush2.bf16.xpose.msra.mxu0 0
        %1124 = vmatprep.subr.bf16.mxu0 0
        %1125 = vmatpush2.bf16.xpose.msra.mxu0 0
        %1126 = vmatprep.subr.bf16.mxu0 0
        %1127 = vmatpush2.bf16.xpose.msra.mxu0 0
        %1128 = vmatprep.subr.bf16.mxu0 0
        %1129 = vmatpush2.bf16.xpose.msra.mxu0 0
        %1130 = vmatprep.mubr.bf16.mxu0 0
        %1131 = vmatmul.mubr.bf16.gmra.mxu0 %v1093
        %v1132 = vpop.f32.mrf.mxu0
        %v1133 = vadd.f32 %v1066, %v1132
        %v1134 = vpop.f32.mrf.mxu0
        %v1135 = vpop.f32.mrf.mxu0
        %v1136 = vpop.f32.mrf.mxu0
        %1137 = vdwg.mxu0
        %v1139 = vsel %vm1091, %v1080, 0
        %v1142 = vsel %vm1091, %v1085, 0
        %1144 = vmatprep.subr.bf16.mxu0 0
        %1145 = vmatpush1.bf16.xpose.msra.mxu0 0
        %1146 = vmatprep.subr.bf16.mxu0 0
        %1147 = vmatpush1.bf16.xpose.msra.mxu0 0
        %1148 = vmatprep.subr.bf16.mxu0 0
        %1149 = vmatpush1.bf16.xpose.msra.mxu0 0
        %1150 = vmatprep.subr.bf16.mxu0 0
        %1151 = vmatpush1.bf16.xpose.msra.mxu0 0
        %1152 = vmatprep.subr.bf16.mxu0 0
        %1153 = vmatpush1.bf16.xpose.msra.mxu0 0
        %1154 = vmatprep.subr.bf16.mxu0 0
        %1155 = vmatpush1.bf16.xpose.msra.mxu0 0
        %1156 = vmatprep.subr.bf16.mxu0 0
        %1157 = vmatpush1.bf16.xpose.msra.mxu0 0
        %1158 = vmatprep.subr.bf16.mxu0 0
        %1159 = vmatpush1.bf16.xpose.msra.mxu0 %v1142
        %1160 = vmatprep.subr.bf16.mxu0 0
        %1161 = vmatpush2.bf16.xpose.msra.mxu0 0
        %1162 = vmatprep.subr.bf16.mxu0 0
        %1163 = vmatpush2.bf16.xpose.msra.mxu0 0
        %1164 = vmatprep.subr.bf16.mxu0 0
        %1165 = vmatpush2.bf16.xpose.msra.mxu0 0
        %1166 = vmatprep.subr.bf16.mxu0 0
        %1167 = vmatpush2.bf16.xpose.msra.mxu0 0
        %1168 = vmatprep.subr.bf16.mxu0 0
        %1169 = vmatpush2.bf16.xpose.msra.mxu0 0
        %1170 = vmatprep.subr.bf16.mxu0 0
        %1171 = vmatpush2.bf16.xpose.msra.mxu0 0
        %1172 = vmatprep.subr.bf16.mxu0 0
        %1173 = vmatpush2.bf16.xpose.msra.mxu0 0
        %1174 = vmatprep.subr.bf16.mxu0 0
        %1175 = vmatpush2.bf16.xpose.msra.mxu0 0
        %1176 = vmatprep.mubr.bf16.mxu0 0
        %1177 = vmatmul.mubr.bf16.gmra.mxu0 %v1139
        %v1178 = vpop.f32.mrf.mxu0
        %v1179 = vadd.f32 %v1070, %v1178
        %v1180 = vpop.f32.mrf.mxu0
        %v1181 = vpop.f32.mrf.mxu0
        %v1182 = vpop.f32.mrf.mxu0
        %1183 = vdwg.mxu0
        %vm1184 = vcmask 64512
        %v1185 = vsel %vm1184, %v1133, -inf
        %1186 = vmax.xlane.f32.xlu0 %v1185
        %v1187 = vpop.xlane.xlu0 %1186
        %v1188 = vsel %vm1184, %v1179, -inf
        %1189 = vmax.xlane.f32.xlu0 %v1188
        %v1190 = vpop.xlane.xlu0 %1189
        %v1191 = vsub.f32 %v1133, %v1187
        %v1192 = vsub.f32 %v1179, %v1190
        %v1193 = vmul.f32 %v1191, 1.442695
        %v1194 = vpow.pop %v1193
        %v1195 = vmul.f32 %v1192, 1.442695
        %v1196 = vpow.pop %v1195
        %v1197 = vsel %vm1184, %v1194, 0.0
        %1198 = vadd.xlane.f32.xlu0 %v1197
        %v1199 = vpop.xlane.xlu0 %1198
        %v1200 = vsel %vm1184, %v1196, 0.0
        %1201 = vadd.xlane.f32.xlu0 %v1200
        %v1202 = vpop.xlane.xlu0 %1201
        %v1203 = vrcp.pop %v1199
        %v1204 = vrcp.pop %v1202
        %v1205 = vmul.f32 %v1194, %v1203
        %v1206 = vmul.f32 %v1196, %v1204
        %v1207 = vpack.c.bf16 %v1205, %v1205
        %v1208 = vpack.c.bf16 %v1206, %v1206
        %v1210 = vsel %vm1184, %v1207, 0
        %vm1212 = vcmask 1043456
        %v1214 = vsel %vm1212, %v1089, 0
        %1216 = vmatprep.subr.bf16.mxu0 0
        %1217 = vmatpush1.bf16.msra.mxu0 0
        %1218 = vmatprep.subr.bf16.mxu0 0
        %1219 = vmatpush1.bf16.msra.mxu0 0
        %1220 = vmatprep.subr.bf16.mxu0 0
        %1221 = vmatpush1.bf16.msra.mxu0 0
        %1222 = vmatprep.subr.bf16.mxu0 0
        %1223 = vmatpush1.bf16.msra.mxu0 0
        %1224 = vmatprep.subr.bf16.mxu0 0
        %1225 = vmatpush1.bf16.msra.mxu0 0
        %1226 = vmatprep.subr.bf16.mxu0 0
        %1227 = vmatpush1.bf16.msra.mxu0 0
        %1228 = vmatprep.subr.bf16.mxu0 0
        %1229 = vmatpush1.bf16.msra.mxu0 0
        %1230 = vmatprep.subr.bf16.mxu0 0
        %1231 = vmatpush1.bf16.msra.mxu0 %v1214
        %1232 = vmatprep.subr.bf16.mxu0 0
        %1233 = vmatpush2.bf16.msra.mxu0 0
        %1234 = vmatprep.subr.bf16.mxu0 0
        %1235 = vmatpush2.bf16.msra.mxu0 0
        %1236 = vmatprep.subr.bf16.mxu0 0
        %1237 = vmatpush2.bf16.msra.mxu0 0
        %1238 = vmatprep.subr.bf16.mxu0 0
        %1239 = vmatpush2.bf16.msra.mxu0 0
        %1240 = vmatprep.subr.bf16.mxu0 0
        %1241 = vmatpush2.bf16.msra.mxu0 0
        %1242 = vmatprep.subr.bf16.mxu0 0
        %1243 = vmatpush2.bf16.msra.mxu0 0
        %1244 = vmatprep.subr.bf16.mxu0 0
        %1245 = vmatpush2.bf16.msra.mxu0 0
        %1246 = vmatprep.subr.bf16.mxu0 0
        %1247 = vmatpush2.bf16.msra.mxu0 0
        %1248 = vmatprep.mubr.bf16.mxu0 0
        %1249 = vmatmul.mubr.bf16.gmra.mxu0 %v1210
        %v1250 = vpop.f32.mrf.mxu0
        %v1251 = vadd.f32 0.0, %v1250
        %v1252 = vpop.f32.mrf.mxu0
        %v1253 = vpop.f32.mrf.mxu0
        %v1254 = vpop.f32.mrf.mxu0
        %1255 = vdwg.mxu0
        %v1257 = vsel %vm1184, %v1208, 0
        %v1260 = vsel %vm1212, %v1090, 0
        %1262 = vmatprep.subr.bf16.mxu0 0
        %1263 = vmatpush1.bf16.msra.mxu0 0
        %1264 = vmatprep.subr.bf16.mxu0 0
        %1265 = vmatpush1.bf16.msra.mxu0 0
        %1266 = vmatprep.subr.bf16.mxu0 0
        %1267 = vmatpush1.bf16.msra.mxu0 0
        %1268 = vmatprep.subr.bf16.mxu0 0
        %1269 = vmatpush1.bf16.msra.mxu0 0
        %1270 = vmatprep.subr.bf16.mxu0 0
        %1271 = vmatpush1.bf16.msra.mxu0 0
        %1272 = vmatprep.subr.bf16.mxu0 0
        %1273 = vmatpush1.bf16.msra.mxu0 0
        %1274 = vmatprep.subr.bf16.mxu0 0
        %1275 = vmatpush1.bf16.msra.mxu0 0
        %1276 = vmatprep.subr.bf16.mxu0 0
        %1277 = vmatpush1.bf16.msra.mxu0 %v1260
        %1278 = vmatprep.subr.bf16.mxu0 0
        %1279 = vmatpush2.bf16.msra.mxu0 0
        %1280 = vmatprep.subr.bf16.mxu0 0
        %1281 = vmatpush2.bf16.msra.mxu0 0
        %1282 = vmatprep.subr.bf16.mxu0 0
        %1283 = vmatpush2.bf16.msra.mxu0 0
        %1284 = vmatprep.subr.bf16.mxu0 0
        %1285 = vmatpush2.bf16.msra.mxu0 0
        %1286 = vmatprep.subr.bf16.mxu0 0
        %1287 = vmatpush2.bf16.msra.mxu0 0
        %1288 = vmatprep.subr.bf16.mxu0 0
        %1289 = vmatpush2.bf16.msra.mxu0 0
        %1290 = vmatprep.subr.bf16.mxu0 0
        %1291 = vmatpush2.bf16.msra.mxu0 0
        %1292 = vmatprep.subr.bf16.mxu0 0
        %1293 = vmatpush2.bf16.msra.mxu0 0
        %1294 = vmatprep.mubr.bf16.mxu0 0
        %1295 = vmatmul.mubr.bf16.gmra.mxu0 %v1257
        %v1296 = vpop.f32.mrf.mxu0
        %v1297 = vadd.f32 0.0, %v1296
        %v1298 = vpop.f32.mrf.mxu0
        %v1299 = vpop.f32.mrf.mxu0
        %v1300 = vpop.f32.mrf.mxu0
        %1301 = vdwg.mxu0
        %1302 = vrot.lane.b32.xlu0 %v1079, 96
        %v1303 = vpop.permute.xlu0 %1302
        %1304 = vrot.lane.b32.xlu0 %v1084, 96
        %v1305 = vpop.permute.xlu0 %1304
        %v1307 = vsel %vm1091, %v1303, 0
        %v1310 = vsel %vm1091, %v1305, 0
        %1312 = vmatprep.subr.bf16.mxu0 0
        %1313 = vmatpush1.bf16.xpose.msra.mxu0 0
        %1314 = vmatprep.subr.bf16.mxu0 0
        %1315 = vmatpush1.bf16.xpose.msra.mxu0 0
        %1316 = vmatprep.subr.bf16.mxu0 0
        %1317 = vmatpush1.bf16.xpose.msra.mxu0 0
        %1318 = vmatprep.subr.bf16.mxu0 0
        %1319 = vmatpush1.bf16.xpose.msra.mxu0 0
        %1320 = vmatprep.subr.bf16.mxu0 0
        %1321 = vmatpush1.bf16.xpose.msra.mxu0 0
        %1322 = vmatprep.subr.bf16.mxu0 0
        %1323 = vmatpush1.bf16.xpose.msra.mxu0 0
        %1324 = vmatprep.subr.bf16.mxu0 0
        %1325 = vmatpush1.bf16.xpose.msra.mxu0 0
        %1326 = vmatprep.subr.bf16.mxu0 0
        %1327 = vmatpush1.bf16.xpose.msra.mxu0 %v1310
        %1328 = vmatprep.subr.bf16.mxu0 0
        %1329 = vmatpush2.bf16.xpose.msra.mxu0 0
        %1330 = vmatprep.subr.bf16.mxu0 0
        %1331 = vmatpush2.bf16.xpose.msra.mxu0 0
        %1332 = vmatprep.subr.bf16.mxu0 0
        %1333 = vmatpush2.bf16.xpose.msra.mxu0 0
        %1334 = vmatprep.subr.bf16.mxu0 0
        %1335 = vmatpush2.bf16.xpose.msra.mxu0 0
        %1336 = vmatprep.subr.bf16.mxu0 0
        %1337 = vmatpush2.bf16.xpose.msra.mxu0 0
        %1338 = vmatprep.subr.bf16.mxu0 0
        %1339 = vmatpush2.bf16.xpose.msra.mxu0 0
        %1340 = vmatprep.subr.bf16.mxu0 0
        %1341 = vmatpush2.bf16.xpose.msra.mxu0 0
        %1342 = vmatprep.subr.bf16.mxu0 0
        %1343 = vmatpush2.bf16.xpose.msra.mxu0 0
        %1344 = vmatprep.mubr.bf16.mxu0 0
        %1345 = vmatmul.mubr.bf16.gmra.mxu0 %v1307
        %v1346 = vpop.f32.mrf.mxu0
        %v1347 = vadd.f32 %v1066, %v1346
        %v1348 = vpop.f32.mrf.mxu0
        %v1349 = vpop.f32.mrf.mxu0
        %v1350 = vpop.f32.mrf.mxu0
        %1351 = vdwg.mxu0
        %1352 = vrot.lane.b32.xlu0 %v1080, 96
        %v1353 = vpop.permute.xlu0 %1352
        %1354 = vrot.lane.b32.xlu0 %v1085, 96
        %v1355 = vpop.permute.xlu0 %1354
        %v1357 = vsel %vm1091, %v1353, 0
        %v1360 = vsel %vm1091, %v1355, 0
        %1362 = vmatprep.subr.bf16.mxu0 0
        %1363 = vmatpush1.bf16.xpose.msra.mxu0 0
        %1364 = vmatprep.subr.bf16.mxu0 0
        %1365 = vmatpush1.bf16.xpose.msra.mxu0 0
        %1366 = vmatprep.subr.bf16.mxu0 0
        %1367 = vmatpush1.bf16.xpose.msra.mxu0 0
        %1368 = vmatprep.subr.bf16.mxu0 0
        %1369 = vmatpush1.bf16.xpose.msra.mxu0 0
        %1370 = vmatprep.subr.bf16.mxu0 0
        %1371 = vmatpush1.bf16.xpose.msra.mxu0 0
        %1372 = vmatprep.subr.bf16.mxu0 0
        %1373 = vmatpush1.bf16.xpose.msra.mxu0 0
        %1374 = vmatprep.subr.bf16.mxu0 0
        %1375 = vmatpush1.bf16.xpose.msra.mxu0 0
        %1376 = vmatprep.subr.bf16.mxu0 0
        %1377 = vmatpush1.bf16.xpose.msra.mxu0 %v1360
        %1378 = vmatprep.subr.bf16.mxu0 0
        %1379 = vmatpush2.bf16.xpose.msra.mxu0 0
        %1380 = vmatprep.subr.bf16.mxu0 0
        %1381 = vmatpush2.bf16.xpose.msra.mxu0 0
        %1382 = vmatprep.subr.bf16.mxu0 0
        %1383 = vmatpush2.bf16.xpose.msra.mxu0 0
        %1384 = vmatprep.subr.bf16.mxu0 0
        %1385 = vmatpush2.bf16.xpose.msra.mxu0 0
        %1386 = vmatprep.subr.bf16.mxu0 0
        %1387 = vmatpush2.bf16.xpose.msra.mxu0 0
        %1388 = vmatprep.subr.bf16.mxu0 0
        %1389 = vmatpush2.bf16.xpose.msra.mxu0 0
        %1390 = vmatprep.subr.bf16.mxu0 0
        %1391 = vmatpush2.bf16.xpose.msra.mxu0 0
        %1392 = vmatprep.subr.bf16.mxu0 0
        %1393 = vmatpush2.bf16.xpose.msra.mxu0 0
        %1394 = vmatprep.mubr.bf16.mxu0 0
        %1395 = vmatmul.mubr.bf16.gmra.mxu0 %v1357
        %v1396 = vpop.f32.mrf.mxu0
        %v1397 = vadd.f32 %v1070, %v1396
        %v1398 = vpop.f32.mrf.mxu0
        %v1399 = vpop.f32.mrf.mxu0
        %v1400 = vpop.f32.mrf.mxu0
        %1401 = vdwg.mxu0
        %v1402 = vsel %vm1184, %v1347, -inf
        %1403 = vmax.xlane.f32.xlu0 %v1402
        %v1404 = vpop.xlane.xlu0 %1403
        %v1405 = vsel %vm1184, %v1397, -inf
        %1406 = vmax.xlane.f32.xlu0 %v1405
        %v1407 = vpop.xlane.xlu0 %1406
        %v1408 = vsub.f32 %v1347, %v1404
        %v1409 = vsub.f32 %v1397, %v1407
        %v1410 = vmul.f32 %v1408, 1.442695
        %v1411 = vpow.pop %v1410
        %v1412 = vmul.f32 %v1409, 1.442695
        %v1413 = vpow.pop %v1412
        %v1414 = vsel %vm1184, %v1411, 0.0
        %1415 = vadd.xlane.f32.xlu0 %v1414
        %v1416 = vpop.xlane.xlu0 %1415
        %v1417 = vsel %vm1184, %v1413, 0.0
        %1418 = vadd.xlane.f32.xlu0 %v1417
        %v1419 = vpop.xlane.xlu0 %1418
        %v1420 = vrcp.pop %v1416
        %v1421 = vrcp.pop %v1419
        %v1422 = vmul.f32 %v1411, %v1420
        %v1423 = vmul.f32 %v1413, %v1421
        %v1424 = vpack.c.bf16 %v1422, %v1422
        %v1425 = vpack.c.bf16 %v1423, %v1423
        %1426 = vrot.lane.b32.xlu0 %v1089, 96
        %v1427 = vpop.permute.xlu0 %1426
        %v1429 = vsel %vm1184, %v1424, 0
        %v1432 = vsel %vm1212, %v1427, 0
        %1434 = vmatprep.subr.bf16.mxu0 0
        %1435 = vmatpush1.bf16.msra.mxu0 0
        %1436 = vmatprep.subr.bf16.mxu0 0
        %1437 = vmatpush1.bf16.msra.mxu0 0
        %1438 = vmatprep.subr.bf16.mxu0 0
        %1439 = vmatpush1.bf16.msra.mxu0 0
        %1440 = vmatprep.subr.bf16.mxu0 0
        %1441 = vmatpush1.bf16.msra.mxu0 0
        %1442 = vmatprep.subr.bf16.mxu0 0
        %1443 = vmatpush1.bf16.msra.mxu0 0
        %1444 = vmatprep.subr.bf16.mxu0 0
        %1445 = vmatpush1.bf16.msra.mxu0 0
        %1446 = vmatprep.subr.bf16.mxu0 0
        %1447 = vmatpush1.bf16.msra.mxu0 0
        %1448 = vmatprep.subr.bf16.mxu0 0
        %1449 = vmatpush1.bf16.msra.mxu0 %v1432
        %1450 = vmatprep.subr.bf16.mxu0 0
        %1451 = vmatpush2.bf16.msra.mxu0 0
        %1452 = vmatprep.subr.bf16.mxu0 0
        %1453 = vmatpush2.bf16.msra.mxu0 0
        %1454 = vmatprep.subr.bf16.mxu0 0
        %1455 = vmatpush2.bf16.msra.mxu0 0
        %1456 = vmatprep.subr.bf16.mxu0 0
        %1457 = vmatpush2.bf16.msra.mxu0 0
        %1458 = vmatprep.subr.bf16.mxu0 0
        %1459 = vmatpush2.bf16.msra.mxu0 0
        %1460 = vmatprep.subr.bf16.mxu0 0
        %1461 = vmatpush2.bf16.msra.mxu0 0
        %1462 = vmatprep.subr.bf16.mxu0 0
        %1463 = vmatpush2.bf16.msra.mxu0 0
        %1464 = vmatprep.subr.bf16.mxu0 0
        %1465 = vmatpush2.bf16.msra.mxu0 0
        %1466 = vmatprep.mubr.bf16.mxu0 0
        %1467 = vmatmul.mubr.bf16.gmra.mxu0 %v1429
        %v1468 = vpop.f32.mrf.mxu0
        %v1469 = vadd.f32 0.0, %v1468
        %v1470 = vpop.f32.mrf.mxu0
        %v1471 = vpop.f32.mrf.mxu0
        %v1472 = vpop.f32.mrf.mxu0
        %1473 = vdwg.mxu0
        %1474 = vrot.lane.b32.xlu0 %v1090, 96
        %v1475 = vpop.permute.xlu0 %1474
        %v1477 = vsel %vm1184, %v1425, 0
        %v1480 = vsel %vm1212, %v1475, 0
        %1482 = vmatprep.subr.bf16.mxu0 0
        %1483 = vmatpush1.bf16.msra.mxu0 0
        %1484 = vmatprep.subr.bf16.mxu0 0
        %1485 = vmatpush1.bf16.msra.mxu0 0
        %1486 = vmatprep.subr.bf16.mxu0 0
        %1487 = vmatpush1.bf16.msra.mxu0 0
        %1488 = vmatprep.subr.bf16.mxu0 0
        %1489 = vmatpush1.bf16.msra.mxu0 0
        %1490 = vmatprep.subr.bf16.mxu0 0
        %1491 = vmatpush1.bf16.msra.mxu0 0
        %1492 = vmatprep.subr.bf16.mxu0 0
        %1493 = vmatpush1.bf16.msra.mxu0 0
        %1494 = vmatprep.subr.bf16.mxu0 0
        %1495 = vmatpush1.bf16.msra.mxu0 0
        %1496 = vmatprep.subr.bf16.mxu0 0
        %1497 = vmatpush1.bf16.msra.mxu0 %v1480
        %1498 = vmatprep.subr.bf16.mxu0 0
        %1499 = vmatpush2.bf16.msra.mxu0 0
        %1500 = vmatprep.subr.bf16.mxu0 0
        %1501 = vmatpush2.bf16.msra.mxu0 0
        %1502 = vmatprep.subr.bf16.mxu0 0
        %1503 = vmatpush2.bf16.msra.mxu0 0
        %1504 = vmatprep.subr.bf16.mxu0 0
        %1505 = vmatpush2.bf16.msra.mxu0 0
        %1506 = vmatprep.subr.bf16.mxu0 0
        %1507 = vmatpush2.bf16.msra.mxu0 0
        %1508 = vmatprep.subr.bf16.mxu0 0
        %1509 = vmatpush2.bf16.msra.mxu0 0
        %1510 = vmatprep.subr.bf16.mxu0 0
        %1511 = vmatpush2.bf16.msra.mxu0 0
        %1512 = vmatprep.subr.bf16.mxu0 0
        %1513 = vmatpush2.bf16.msra.mxu0 0
        %1514 = vmatprep.mubr.bf16.mxu0 0
        %1515 = vmatmul.mubr.bf16.gmra.mxu0 %v1477
        %v1516 = vpop.f32.mrf.mxu0
        %v1517 = vadd.f32 0.0, %v1516
        %v1518 = vpop.f32.mrf.mxu0
        %v1519 = vpop.f32.mrf.mxu0
        %v1520 = vpop.f32.mrf.mxu0
        %1521 = vdwg.mxu0
        %1522 = vrot.lane.b32.xlu0 %v1079, 64
        %v1523 = vpop.permute.xlu0 %1522
        %1524 = vrot.lane.b32.xlu0 %v1084, 64
        %v1525 = vpop.permute.xlu0 %1524
        %v1527 = vsel %vm1091, %v1523, 0
        %v1530 = vsel %vm1091, %v1525, 0
        %1532 = vmatprep.subr.bf16.mxu0 0
        %1533 = vmatpush1.bf16.xpose.msra.mxu0 0
        %1534 = vmatprep.subr.bf16.mxu0 0
        %1535 = vmatpush1.bf16.xpose.msra.mxu0 0
        %1536 = vmatprep.subr.bf16.mxu0 0
        %1537 = vmatpush1.bf16.xpose.msra.mxu0 0
        %1538 = vmatprep.subr.bf16.mxu0 0
        %1539 = vmatpush1.bf16.xpose.msra.mxu0 0
        %1540 = vmatprep.subr.bf16.mxu0 0
        %1541 = vmatpush1.bf16.xpose.msra.mxu0 0
        %1542 = vmatprep.subr.bf16.mxu0 0
        %1543 = vmatpush1.bf16.xpose.msra.mxu0 0
        %1544 = vmatprep.subr.bf16.mxu0 0
        %1545 = vmatpush1.bf16.xpose.msra.mxu0 0
        %1546 = vmatprep.subr.bf16.mxu0 0
        %1547 = vmatpush1.bf16.xpose.msra.mxu0 %v1530
        %1548 = vmatprep.subr.bf16.mxu0 0
        %1549 = vmatpush2.bf16.xpose.msra.mxu0 0
        %1550 = vmatprep.subr.bf16.mxu0 0
        %1551 = vmatpush2.bf16.xpose.msra.mxu0 0
        %1552 = vmatprep.subr.bf16.mxu0 0
        %1553 = vmatpush2.bf16.xpose.msra.mxu0 0
        %1554 = vmatprep.subr.bf16.mxu0 0
        %1555 = vmatpush2.bf16.xpose.msra.mxu0 0
        %1556 = vmatprep.subr.bf16.mxu0 0
        %1557 = vmatpush2.bf16.xpose.msra.mxu0 0
        %1558 = vmatprep.subr.bf16.mxu0 0
        %1559 = vmatpush2.bf16.xpose.msra.mxu0 0
        %1560 = vmatprep.subr.bf16.mxu0 0
        %1561 = vmatpush2.bf16.xpose.msra.mxu0 0
        %1562 = vmatprep.subr.bf16.mxu0 0
        %1563 = vmatpush2.bf16.xpose.msra.mxu0 0
        %1564 = vmatprep.mubr.bf16.mxu0 0
        %1565 = vmatmul.mubr.bf16.gmra.mxu0 %v1527
        %v1566 = vpop.f32.mrf.mxu0
        %v1567 = vadd.f32 %v1066, %v1566
        %v1568 = vpop.f32.mrf.mxu0
        %v1569 = vpop.f32.mrf.mxu0
        %v1570 = vpop.f32.mrf.mxu0
        %1571 = vdwg.mxu0
        %1572 = vrot.lane.b32.xlu0 %v1080, 64
        %v1573 = vpop.permute.xlu0 %1572
        %1574 = vrot.lane.b32.xlu0 %v1085, 64
        %v1575 = vpop.permute.xlu0 %1574
        %v1577 = vsel %vm1091, %v1573, 0
        %v1580 = vsel %vm1091, %v1575, 0
        %1582 = vmatprep.subr.bf16.mxu0 0
        %1583 = vmatpush1.bf16.xpose.msra.mxu0 0
        %1584 = vmatprep.subr.bf16.mxu0 0
        %1585 = vmatpush1.bf16.xpose.msra.mxu0 0
        %1586 = vmatprep.subr.bf16.mxu0 0
        %1587 = vmatpush1.bf16.xpose.msra.mxu0 0
        %1588 = vmatprep.subr.bf16.mxu0 0
        %1589 = vmatpush1.bf16.xpose.msra.mxu0 0
        %1590 = vmatprep.subr.bf16.mxu0 0
        %1591 = vmatpush1.bf16.xpose.msra.mxu0 0
        %1592 = vmatprep.subr.bf16.mxu0 0
        %1593 = vmatpush1.bf16.xpose.msra.mxu0 0
        %1594 = vmatprep.subr.bf16.mxu0 0
        %1595 = vmatpush1.bf16.xpose.msra.mxu0 0
        %1596 = vmatprep.subr.bf16.mxu0 0
        %1597 = vmatpush1.bf16.xpose.msra.mxu0 %v1580
        %1598 = vmatprep.subr.bf16.mxu0 0
        %1599 = vmatpush2.bf16.xpose.msra.mxu0 0
        %1600 = vmatprep.subr.bf16.mxu0 0
        %1601 = vmatpush2.bf16.xpose.msra.mxu0 0
        %1602 = vmatprep.subr.bf16.mxu0 0
        %1603 = vmatpush2.bf16.xpose.msra.mxu0 0
        %1604 = vmatprep.subr.bf16.mxu0 0
        %1605 = vmatpush2.bf16.xpose.msra.mxu0 0
        %1606 = vmatprep.subr.bf16.mxu0 0
        %1607 = vmatpush2.bf16.xpose.msra.mxu0 0
        %1608 = vmatprep.subr.bf16.mxu0 0
        %1609 = vmatpush2.bf16.xpose.msra.mxu0 0
        %1610 = vmatprep.subr.bf16.mxu0 0
        %1611 = vmatpush2.bf16.xpose.msra.mxu0 0
        %1612 = vmatprep.subr.bf16.mxu0 0
        %1613 = vmatpush2.bf16.xpose.msra.mxu0 0
        %1614 = vmatprep.mubr.bf16.mxu0 0
        %1615 = vmatmul.mubr.bf16.gmra.mxu0 %v1577
        %v1616 = vpop.f32.mrf.mxu0
        %v1617 = vadd.f32 %v1070, %v1616
        %v1618 = vpop.f32.mrf.mxu0
        %v1619 = vpop.f32.mrf.mxu0
        %v1620 = vpop.f32.mrf.mxu0
        %1621 = vdwg.mxu0
        %v1622 = vsel %vm1184, %v1567, -inf
        %1623 = vmax.xlane.f32.xlu0 %v1622
        %v1624 = vpop.xlane.xlu0 %1623
        %v1625 = vsel %vm1184, %v1617, -inf
        %1626 = vmax.xlane.f32.xlu0 %v1625
        %v1627 = vpop.xlane.xlu0 %1626
        %v1628 = vsub.f32 %v1567, %v1624
        %v1629 = vsub.f32 %v1617, %v1627
        %v1630 = vmul.f32 %v1628, 1.442695
        %v1631 = vpow.pop %v1630
        %v1632 = vmul.f32 %v1629, 1.442695
        %v1633 = vpow.pop %v1632
        %v1634 = vsel %vm1184, %v1631, 0.0
        %1635 = vadd.xlane.f32.xlu0 %v1634
        %v1636 = vpop.xlane.xlu0 %1635
        %v1637 = vsel %vm1184, %v1633, 0.0
        %1638 = vadd.xlane.f32.xlu0 %v1637
        %v1639 = vpop.xlane.xlu0 %1638
        %v1640 = vrcp.pop %v1636
        %v1641 = vrcp.pop %v1639
        %v1642 = vmul.f32 %v1631, %v1640
        %v1643 = vmul.f32 %v1633, %v1641
        %v1644 = vpack.c.bf16 %v1642, %v1642
        %v1645 = vpack.c.bf16 %v1643, %v1643
        %1646 = vrot.lane.b32.xlu0 %v1089, 64
        %v1647 = vpop.permute.xlu0 %1646
        %v1649 = vsel %vm1184, %v1644, 0
        %v1652 = vsel %vm1212, %v1647, 0
        %1654 = vmatprep.subr.bf16.mxu0 0
        %1655 = vmatpush1.bf16.msra.mxu0 0
        %1656 = vmatprep.subr.bf16.mxu0 0
        %1657 = vmatpush1.bf16.msra.mxu0 0
        %1658 = vmatprep.subr.bf16.mxu0 0
        %1659 = vmatpush1.bf16.msra.mxu0 0
        %1660 = vmatprep.subr.bf16.mxu0 0
        %1661 = vmatpush1.bf16.msra.mxu0 0
        %1662 = vmatprep.subr.bf16.mxu0 0
        %1663 = vmatpush1.bf16.msra.mxu0 0
        %1664 = vmatprep.subr.bf16.mxu0 0
        %1665 = vmatpush1.bf16.msra.mxu0 0
        %1666 = vmatprep.subr.bf16.mxu0 0
        %1667 = vmatpush1.bf16.msra.mxu0 0
        %1668 = vmatprep.subr.bf16.mxu0 0
        %1669 = vmatpush1.bf16.msra.mxu0 %v1652
        %1670 = vmatprep.subr.bf16.mxu0 0
        %1671 = vmatpush2.bf16.msra.mxu0 0
        %1672 = vmatprep.subr.bf16.mxu0 0
        %1673 = vmatpush2.bf16.msra.mxu0 0
        %1674 = vmatprep.subr.bf16.mxu0 0
        %1675 = vmatpush2.bf16.msra.mxu0 0
        %1676 = vmatprep.subr.bf16.mxu0 0
        %1677 = vmatpush2.bf16.msra.mxu0 0
        %1678 = vmatprep.subr.bf16.mxu0 0
        %1679 = vmatpush2.bf16.msra.mxu0 0
        %1680 = vmatprep.subr.bf16.mxu0 0
        %1681 = vmatpush2.bf16.msra.mxu0 0
        %1682 = vmatprep.subr.bf16.mxu0 0
        %1683 = vmatpush2.bf16.msra.mxu0 0
        %1684 = vmatprep.subr.bf16.mxu0 0
        %1685 = vmatpush2.bf16.msra.mxu0 0
        %1686 = vmatprep.mubr.bf16.mxu0 0
        %1687 = vmatmul.mubr.bf16.gmra.mxu0 %v1649
        %v1688 = vpop.f32.mrf.mxu0
        %v1689 = vadd.f32 0.0, %v1688
        %v1690 = vpop.f32.mrf.mxu0
        %v1691 = vpop.f32.mrf.mxu0
        %v1692 = vpop.f32.mrf.mxu0
        %1693 = vdwg.mxu0
        %1694 = vrot.lane.b32.xlu0 %v1090, 64
        %v1695 = vpop.permute.xlu0 %1694
        %v1697 = vsel %vm1184, %v1645, 0
        %v1700 = vsel %vm1212, %v1695, 0
        %1702 = vmatprep.subr.bf16.mxu0 0
        %1703 = vmatpush1.bf16.msra.mxu0 0
        %1704 = vmatprep.subr.bf16.mxu0 0
        %1705 = vmatpush1.bf16.msra.mxu0 0
        %1706 = vmatprep.subr.bf16.mxu0 0
        %1707 = vmatpush1.bf16.msra.mxu0 0
        %1708 = vmatprep.subr.bf16.mxu0 0
        %1709 = vmatpush1.bf16.msra.mxu0 0
        %1710 = vmatprep.subr.bf16.mxu0 0
        %1711 = vmatpush1.bf16.msra.mxu0 0
        %1712 = vmatprep.subr.bf16.mxu0 0
        %1713 = vmatpush1.bf16.msra.mxu0 0
        %1714 = vmatprep.subr.bf16.mxu0 0
        %1715 = vmatpush1.bf16.msra.mxu0 0
        %1716 = vmatprep.subr.bf16.mxu0 0
        %1717 = vmatpush1.bf16.msra.mxu0 %v1700
        %1718 = vmatprep.subr.bf16.mxu0 0
        %1719 = vmatpush2.bf16.msra.mxu0 0
        %1720 = vmatprep.subr.bf16.mxu0 0
        %1721 = vmatpush2.bf16.msra.mxu0 0
        %1722 = vmatprep.subr.bf16.mxu0 0
        %1723 = vmatpush2.bf16.msra.mxu0 0
        %1724 = vmatprep.subr.bf16.mxu0 0
        %1725 = vmatpush2.bf16.msra.mxu0 0
        %1726 = vmatprep.subr.bf16.mxu0 0
        %1727 = vmatpush2.bf16.msra.mxu0 0
        %1728 = vmatprep.subr.bf16.mxu0 0
        %1729 = vmatpush2.bf16.msra.mxu0 0
        %1730 = vmatprep.subr.bf16.mxu0 0
        %1731 = vmatpush2.bf16.msra.mxu0 0
        %1732 = vmatprep.subr.bf16.mxu0 0
        %1733 = vmatpush2.bf16.msra.mxu0 0
        %1734 = vmatprep.mubr.bf16.mxu0 0
        %1735 = vmatmul.mubr.bf16.gmra.mxu0 %v1697
        %v1736 = vpop.f32.mrf.mxu0
        %v1737 = vadd.f32 0.0, %v1736
        %v1738 = vpop.f32.mrf.mxu0
        %v1739 = vpop.f32.mrf.mxu0
        %v1740 = vpop.f32.mrf.mxu0
        %1741 = vdwg.mxu0
        %1742 = vrot.lane.b32.xlu0 %v1079, 32
        %v1743 = vpop.permute.xlu0 %1742
        %1744 = vrot.lane.b32.xlu0 %v1084, 32
        %v1745 = vpop.permute.xlu0 %1744
        %v1747 = vsel %vm1091, %v1743, 0
        %v1750 = vsel %vm1091, %v1745, 0
        %1752 = vmatprep.subr.bf16.mxu0 0
        %1753 = vmatpush1.bf16.xpose.msra.mxu0 0
        %1754 = vmatprep.subr.bf16.mxu0 0
        %1755 = vmatpush1.bf16.xpose.msra.mxu0 0
        %1756 = vmatprep.subr.bf16.mxu0 0
        %1757 = vmatpush1.bf16.xpose.msra.mxu0 0
        %1758 = vmatprep.subr.bf16.mxu0 0
        %1759 = vmatpush1.bf16.xpose.msra.mxu0 0
        %1760 = vmatprep.subr.bf16.mxu0 0
        %1761 = vmatpush1.bf16.xpose.msra.mxu0 0
        %1762 = vmatprep.subr.bf16.mxu0 0
        %1763 = vmatpush1.bf16.xpose.msra.mxu0 0
        %1764 = vmatprep.subr.bf16.mxu0 0
        %1765 = vmatpush1.bf16.xpose.msra.mxu0 0
        %1766 = vmatprep.subr.bf16.mxu0 0
        %1767 = vmatpush1.bf16.xpose.msra.mxu0 %v1750
        %1768 = vmatprep.subr.bf16.mxu0 0
        %1769 = vmatpush2.bf16.xpose.msra.mxu0 0
        %1770 = vmatprep.subr.bf16.mxu0 0
        %1771 = vmatpush2.bf16.xpose.msra.mxu0 0
        %1772 = vmatprep.subr.bf16.mxu0 0
        %1773 = vmatpush2.bf16.xpose.msra.mxu0 0
        %1774 = vmatprep.subr.bf16.mxu0 0
        %1775 = vmatpush2.bf16.xpose.msra.mxu0 0
        %1776 = vmatprep.subr.bf16.mxu0 0
        %1777 = vmatpush2.bf16.xpose.msra.mxu0 0
        %1778 = vmatprep.subr.bf16.mxu0 0
        %1779 = vmatpush2.bf16.xpose.msra.mxu0 0
        %1780 = vmatprep.subr.bf16.mxu0 0
        %1781 = vmatpush2.bf16.xpose.msra.mxu0 0
        %1782 = vmatprep.subr.bf16.mxu0 0
        %1783 = vmatpush2.bf16.xpose.msra.mxu0 0
        %1784 = vmatprep.mubr.bf16.mxu0 0
        %1785 = vmatmul.mubr.bf16.gmra.mxu0 %v1747
        %v1786 = vpop.f32.mrf.mxu0
        %v1787 = vadd.f32 %v1066, %v1786
        %v1788 = vpop.f32.mrf.mxu0
        %v1789 = vpop.f32.mrf.mxu0
        %v1790 = vpop.f32.mrf.mxu0
        %1791 = vdwg.mxu0
        %1792 = vrot.lane.b32.xlu0 %v1080, 32
        %v1793 = vpop.permute.xlu0 %1792
        %1794 = vrot.lane.b32.xlu0 %v1085, 32
        %v1795 = vpop.permute.xlu0 %1794
        %v1797 = vsel %vm1091, %v1793, 0
        %v1800 = vsel %vm1091, %v1795, 0
        %1802 = vmatprep.subr.bf16.mxu0 0
        %1803 = vmatpush1.bf16.xpose.msra.mxu0 0
        %1804 = vmatprep.subr.bf16.mxu0 0
        %1805 = vmatpush1.bf16.xpose.msra.mxu0 0
        %1806 = vmatprep.subr.bf16.mxu0 0
        %1807 = vmatpush1.bf16.xpose.msra.mxu0 0
        %1808 = vmatprep.subr.bf16.mxu0 0
        %1809 = vmatpush1.bf16.xpose.msra.mxu0 0
        %1810 = vmatprep.subr.bf16.mxu0 0
        %1811 = vmatpush1.bf16.xpose.msra.mxu0 0
        %1812 = vmatprep.subr.bf16.mxu0 0
        %1813 = vmatpush1.bf16.xpose.msra.mxu0 0
        %1814 = vmatprep.subr.bf16.mxu0 0
        %1815 = vmatpush1.bf16.xpose.msra.mxu0 0
        %1816 = vmatprep.subr.bf16.mxu0 0
        %1817 = vmatpush1.bf16.xpose.msra.mxu0 %v1800
        %1818 = vmatprep.subr.bf16.mxu0 0
        %1819 = vmatpush2.bf16.xpose.msra.mxu0 0
        %1820 = vmatprep.subr.bf16.mxu0 0
        %1821 = vmatpush2.bf16.xpose.msra.mxu0 0
        %1822 = vmatprep.subr.bf16.mxu0 0
        %1823 = vmatpush2.bf16.xpose.msra.mxu0 0
        %1824 = vmatprep.subr.bf16.mxu0 0
        %1825 = vmatpush2.bf16.xpose.msra.mxu0 0
        %1826 = vmatprep.subr.bf16.mxu0 0
        %1827 = vmatpush2.bf16.xpose.msra.mxu0 0
        %1828 = vmatprep.subr.bf16.mxu0 0
        %1829 = vmatpush2.bf16.xpose.msra.mxu0 0
        %1830 = vmatprep.subr.bf16.mxu0 0
        %1831 = vmatpush2.bf16.xpose.msra.mxu0 0
        %1832 = vmatprep.subr.bf16.mxu0 0
        %1833 = vmatpush2.bf16.xpose.msra.mxu0 0
        %1834 = vmatprep.mubr.bf16.mxu0 0
        %1835 = vmatmul.mubr.bf16.gmra.mxu0 %v1797
        %v1836 = vpop.f32.mrf.mxu0
        %v1837 = vadd.f32 %v1070, %v1836
        %v1838 = vpop.f32.mrf.mxu0
        %v1839 = vpop.f32.mrf.mxu0
        %v1840 = vpop.f32.mrf.mxu0
        %1841 = vdwg.mxu0
        %v1842 = vsel %vm1184, %v1787, -inf
        %1843 = vmax.xlane.f32.xlu0 %v1842
        %v1844 = vpop.xlane.xlu0 %1843
        %v1845 = vsel %vm1184, %v1837, -inf
        %1846 = vmax.xlane.f32.xlu0 %v1845
        %v1847 = vpop.xlane.xlu0 %1846
        %v1848 = vsub.f32 %v1787, %v1844
        %v1849 = vsub.f32 %v1837, %v1847
        %v1850 = vmul.f32 %v1848, 1.442695
        %v1851 = vpow.pop %v1850
        %v1852 = vmul.f32 %v1849, 1.442695
        %v1853 = vpow.pop %v1852
        %v1854 = vsel %vm1184, %v1851, 0.0
        %1855 = vadd.xlane.f32.xlu0 %v1854
        %v1856 = vpop.xlane.xlu0 %1855
        %v1857 = vsel %vm1184, %v1853, 0.0
        %1858 = vadd.xlane.f32.xlu0 %v1857
        %v1859 = vpop.xlane.xlu0 %1858
        %v1860 = vrcp.pop %v1856
        %v1861 = vrcp.pop %v1859
        %v1862 = vmul.f32 %v1851, %v1860
        %v1863 = vmul.f32 %v1853, %v1861
        %v1864 = vpack.c.bf16 %v1862, %v1862
        %v1865 = vpack.c.bf16 %v1863, %v1863
        %1866 = vrot.lane.b32.xlu0 %v1089, 32
        %v1867 = vpop.permute.xlu0 %1866
        %v1869 = vsel %vm1184, %v1864, 0
        %v1872 = vsel %vm1212, %v1867, 0
        %1874 = vmatprep.subr.bf16.mxu0 0
        %1875 = vmatpush1.bf16.msra.mxu0 0
        %1876 = vmatprep.subr.bf16.mxu0 0
        %1877 = vmatpush1.bf16.msra.mxu0 0
        %1878 = vmatprep.subr.bf16.mxu0 0
        %1879 = vmatpush1.bf16.msra.mxu0 0
        %1880 = vmatprep.subr.bf16.mxu0 0
        %1881 = vmatpush1.bf16.msra.mxu0 0
        %1882 = vmatprep.subr.bf16.mxu0 0
        %1883 = vmatpush1.bf16.msra.mxu0 0
        %1884 = vmatprep.subr.bf16.mxu0 0
        %1885 = vmatpush1.bf16.msra.mxu0 0
        %1886 = vmatprep.subr.bf16.mxu0 0
        %1887 = vmatpush1.bf16.msra.mxu0 0
        %1888 = vmatprep.subr.bf16.mxu0 0
        %1889 = vmatpush1.bf16.msra.mxu0 %v1872
        %1890 = vmatprep.subr.bf16.mxu0 0
        %1891 = vmatpush2.bf16.msra.mxu0 0
        %1892 = vmatprep.subr.bf16.mxu0 0
        %1893 = vmatpush2.bf16.msra.mxu0 0
        %1894 = vmatprep.subr.bf16.mxu0 0
        %1895 = vmatpush2.bf16.msra.mxu0 0
        %1896 = vmatprep.subr.bf16.mxu0 0
        %1897 = vmatpush2.bf16.msra.mxu0 0
        %1898 = vmatprep.subr.bf16.mxu0 0
        %1899 = vmatpush2.bf16.msra.mxu0 0
        %1900 = vmatprep.subr.bf16.mxu0 0
        %1901 = vmatpush2.bf16.msra.mxu0 0
        %1902 = vmatprep.subr.bf16.mxu0 0
        %1903 = vmatpush2.bf16.msra.mxu0 0
        %1904 = vmatprep.subr.bf16.mxu0 0
        %1905 = vmatpush2.bf16.msra.mxu0 0
        %1906 = vmatprep.mubr.bf16.mxu0 0
        %1907 = vmatmul.mubr.bf16.gmra.mxu0 %v1869
        %v1908 = vpop.f32.mrf.mxu0
        %v1909 = vadd.f32 0.0, %v1908
        %v1910 = vpop.f32.mrf.mxu0
        %v1911 = vpop.f32.mrf.mxu0
        %v1912 = vpop.f32.mrf.mxu0
        %1913 = vdwg.mxu0
        %1914 = vrot.lane.b32.xlu0 %v1090, 32
        %v1915 = vpop.permute.xlu0 %1914
        %v1917 = vsel %vm1184, %v1865, 0
        %v1920 = vsel %vm1212, %v1915, 0
        %1922 = vmatprep.subr.bf16.mxu0 0
        %1923 = vmatpush1.bf16.msra.mxu0 0
        %1924 = vmatprep.subr.bf16.mxu0 0
        %1925 = vmatpush1.bf16.msra.mxu0 0
        %1926 = vmatprep.subr.bf16.mxu0 0
        %1927 = vmatpush1.bf16.msra.mxu0 0
        %1928 = vmatprep.subr.bf16.mxu0 0
        %1929 = vmatpush1.bf16.msra.mxu0 0
        %1930 = vmatprep.subr.bf16.mxu0 0
        %1931 = vmatpush1.bf16.msra.mxu0 0
        %1932 = vmatprep.subr.bf16.mxu0 0
        %1933 = vmatpush1.bf16.msra.mxu0 0
        %1934 = vmatprep.subr.bf16.mxu0 0
        %1935 = vmatpush1.bf16.msra.mxu0 0
        %1936 = vmatprep.subr.bf16.mxu0 0
        %1937 = vmatpush1.bf16.msra.mxu0 %v1920
        %1938 = vmatprep.subr.bf16.mxu0 0
        %1939 = vmatpush2.bf16.msra.mxu0 0
        %1940 = vmatprep.subr.bf16.mxu0 0
        %1941 = vmatpush2.bf16.msra.mxu0 0
        %1942 = vmatprep.subr.bf16.mxu0 0
        %1943 = vmatpush2.bf16.msra.mxu0 0
        %1944 = vmatprep.subr.bf16.mxu0 0
        %1945 = vmatpush2.bf16.msra.mxu0 0
        %1946 = vmatprep.subr.bf16.mxu0 0
        %1947 = vmatpush2.bf16.msra.mxu0 0
        %1948 = vmatprep.subr.bf16.mxu0 0
        %1949 = vmatpush2.bf16.msra.mxu0 0
        %1950 = vmatprep.subr.bf16.mxu0 0
        %1951 = vmatpush2.bf16.msra.mxu0 0
        %1952 = vmatprep.subr.bf16.mxu0 0
        %1953 = vmatpush2.bf16.msra.mxu0 0
        %1954 = vmatprep.mubr.bf16.mxu0 0
        %1955 = vmatmul.mubr.bf16.gmra.mxu0 %v1917
        %v1956 = vpop.f32.mrf.mxu0
        %v1957 = vadd.f32 0.0, %v1956
        %v1958 = vpop.f32.mrf.mxu0
        %v1959 = vpop.f32.mrf.mxu0
        %v1960 = vpop.f32.mrf.mxu0
        %1961 = vdwg.mxu0
        %1964 = vrot.lane.b32.xlu0 %v1469, 32
        %v1965 = vpop.permute.xlu0 %1964
        %1966 = vrot.lane.b32.xlu0 %v1517, 32
        %v1967 = vpop.permute.xlu0 %1966
        %1972 = vrot.lane.b32.xlu0 %v1689, 64
        %v1973 = vpop.permute.xlu0 %1972
        %1974 = vrot.lane.b32.xlu0 %v1737, 64
        %v1975 = vpop.permute.xlu0 %1974
        %1980 = vrot.lane.b32.xlu0 %v1909, 96
        %v1981 = vpop.permute.xlu0 %1980
        %1982 = vrot.lane.b32.xlu0 %v1957, 96
        %v1983 = vpop.permute.xlu0 %1982
        %v1986 = vsel %vm1091, %v1251, %v1965
        %v1987 = vsel %vm1091, %v1297, %v1967
        %vm1988 = vcmask 523264
        %v1989 = vsel %vm1988, %v1986, %v1973
        %v1990 = vsel %vm1988, %v1987, %v1975
        %vm1991 = vcmask 785408
        %v1992 = vsel %vm1991, %v1989, %v1981
        %v1993 = vsel %vm1991, %v1990, %v1983
        %v1994 = vpack.c.bf16 %v1993, %v1992
        %v1995 = vld [vmem:[%s659] sm:$0xf]
        %v1996 = vld [vmem:[%s659 + $0x4] sm:$0xf]
        %v1997 = vld [vmem:[%s659 + $0x8] sm:$0xf]
        %v1998 = vld [vmem:[%s659 + $0xc] sm:$0xf]
        %v1999 = vld [vmem:[%s659 + $0x10] sm:$0xf]
        %v2000 = vld [vmem:[%s659 + $0x14] sm:$0xf]
        %v2001 = vld [vmem:[%s659 + $0x18] sm:$0xf]
        %v2002 = vld [vmem:[%s659 + $0x1c] sm:$0xf]
        %v2003 = vld [vmem:[%s659 + $0x20] sm:$0xf]
        %v2004 = vld [vmem:[%s659 + $0x24] sm:$0xf]
        %v2005 = vld [vmem:[%s659 + $0x28] sm:$0xf]
        %v2006 = vld [vmem:[%s659 + $0x2c] sm:$0xf]
        %v2007 = vld [vmem:[%s659 + $0x30] sm:$0xf]
        %v2008 = vld [vmem:[%s659 + $0x34] sm:$0xf]
        %v2009 = vld [vmem:[%s659 + $0x38] sm:$0xf]
        %v2010 = vld [vmem:[%s659 + $0x3c] sm:$0xf]
        %v2011 = vld [vmem:[%s763] sm:$0x1]
        %v2013 = vlaneseq
        %v2014 = vshrl.u32 %v2013, 7
        %v2015 = vsub.s32 0, %v2014
        %v2016 = vrot.slane %v2011, %v2015
        %v2034 = vunpack.c.l.b16 %v1995
        %v2035 = vunpack.c.l.b16 %v1996
        %v2036 = vunpack.c.l.b16 %v1997
        %v2037 = vunpack.c.l.b16 %v1998
        %v2038 = vunpack.c.l.b16 %v1999
        %v2039 = vunpack.c.l.b16 %v2000
        %v2040 = vunpack.c.l.b16 %v2001
        %v2041 = vunpack.c.l.b16 %v2002
        %v2042 = vunpack.c.l.b16 %v2003
        %v2043 = vunpack.c.l.b16 %v2004
        %v2044 = vunpack.c.l.b16 %v2005
        %v2045 = vunpack.c.l.b16 %v2006
        %v2046 = vunpack.c.l.b16 %v2007
        %v2047 = vunpack.c.l.b16 %v2008
        %v2048 = vunpack.c.l.b16 %v2009
        %v2049 = vunpack.c.l.b16 %v2010
        %v2050 = vpack.c.b16 %v2035, %v2034
        %v2051 = vpack.c.b16 %v2037, %v2036
        %v2052 = vpack.c.b16 %v2039, %v2038
        %v2053 = vpack.c.b16 %v2041, %v2040
        %v2054 = vpack.c.b16 %v2043, %v2042
        %v2055 = vpack.c.b16 %v2045, %v2044
        %v2056 = vpack.c.b16 %v2047, %v2046
        %v2057 = vpack.c.b16 %v2049, %v2048
        %2066 = vmatprep.subr.bf16.mxu0 0
        %2067 = vmatpush1.bf16.msra.mxu0 %v2057
        %2068 = vmatprep.subr.bf16.mxu0 0
        %2069 = vmatpush1.bf16.msra.mxu0 %v2056
        %2070 = vmatprep.subr.bf16.mxu0 0
        %2071 = vmatpush1.bf16.msra.mxu0 %v2055
        %2072 = vmatprep.subr.bf16.mxu0 0
        %2073 = vmatpush1.bf16.msra.mxu0 %v2054
        %2074 = vmatprep.subr.bf16.mxu0 0
        %2075 = vmatpush1.bf16.msra.mxu0 %v2053
        %2076 = vmatprep.subr.bf16.mxu0 0
        %2077 = vmatpush1.bf16.msra.mxu0 %v2052
        %2078 = vmatprep.subr.bf16.mxu0 0
        %2079 = vmatpush1.bf16.msra.mxu0 %v2051
        %2080 = vmatprep.subr.bf16.mxu0 0
        %2081 = vmatpush1.bf16.msra.mxu0 %v2050
        %2082 = vmatprep.subr.bf16.mxu0 0
        %2083 = vmatpush2.bf16.msra.mxu0 0
        %2084 = vmatprep.subr.bf16.mxu0 0
        %2085 = vmatpush2.bf16.msra.mxu0 0
        %2086 = vmatprep.subr.bf16.mxu0 0
        %2087 = vmatpush2.bf16.msra.mxu0 0
        %2088 = vmatprep.subr.bf16.mxu0 0
        %2089 = vmatpush2.bf16.msra.mxu0 0
        %2090 = vmatprep.subr.bf16.mxu0 0
        %2091 = vmatpush2.bf16.msra.mxu0 0
        %2092 = vmatprep.subr.bf16.mxu0 0
        %2093 = vmatpush2.bf16.msra.mxu0 0
        %2094 = vmatprep.subr.bf16.mxu0 0
        %2095 = vmatpush2.bf16.msra.mxu0 0
        %2096 = vmatprep.subr.bf16.mxu0 0
        %2097 = vmatpush2.bf16.msra.mxu0 0
        %2098 = vmatprep.mubr.bf16.mxu0 0
        %2099 = vmatmul.mubr.bf16.gmra.mxu0 %v1994
        %v2100 = vpop.f32.mrf.mxu0
        %v2101 = vadd.f32 %v2016, %v2100
        %v2102 = vpop.f32.mrf.mxu0
        %v2103 = vpop.f32.mrf.mxu0
        %v2104 = vadd.f32 %v2016, %v2103
        %v2105 = vpop.f32.mrf.mxu0
        %2106 = vdwg.mxu0
        %v2107 = vadd.f32 %v793, %v2101
        %v2108 = vadd.f32 %v794, %v2104
        %2109 = vadd.xlane.f32.xlu0 %v2107
        %v2110 = vpop.xlane.xlu0 %2109
        %2111 = vadd.xlane.f32.xlu0 %v2108
        %v2112 = vpop.xlane.xlu0 %2111
        %v2113 = vrcp.pop 128.0
        %v2114 = vmul.f32 %v2110, %v2113
        %v2115 = vmul.f32 %v2112, %v2113
        %v2116 = vsub.f32 %v2107, %v2114
        %v2117 = vsub.f32 %v2108, %v2115
        %v2118 = vmul.f32 %v2116, %v2116
        %v2119 = vmul.f32 %v2117, %v2117
        %2120 = vadd.xlane.f32.xlu0 %v2118
        %v2121 = vpop.xlane.xlu0 %2120
        %2122 = vadd.xlane.f32.xlu0 %v2119
        %v2123 = vpop.xlane.xlu0 %2122
        %v2124 = vmul.f32 %v2121, %v2113
        %v2125 = vmul.f32 %v2123, %v2113
        %v2126 = vadd.f32 %v2124, 1e-05
        %v2127 = vadd.f32 %v2125, 1e-05
        %v2128 = vrsqrt.pop %v2126
        %v2129 = vrsqrt.pop %v2127
        %v2130 = vmul.f32 %v2116, %v2128
        %v2131 = vmul.f32 %v2117, %v2129
        %v2132 = vld [vmem:[%s766] sm:$0x1]
        %v2134 = vlaneseq
        %v2135 = vshrl.u32 %v2134, 7
        %v2136 = vsub.s32 0, %v2135
        %v2137 = vrot.slane %v2132, %v2136
        %v2139 = vmul.f32 %v2130, %v2137
        %v2140 = vmul.f32 %v2131, %v2137
        %v2141 = vld [vmem:[%s769] sm:$0x1]
        %v2143 = vlaneseq
        %v2144 = vshrl.u32 %v2143, 7
        %v2145 = vsub.s32 0, %v2144
        %v2146 = vrot.slane %v2141, %v2145
        %v2148 = vadd.f32 %v2139, %v2146
        %v2149 = vadd.f32 %v2140, %v2146
        %v2150 = vpack.c.bf16 %v2149, %v2148
        %v2151 = vld [vmem:[%s668] sm:$0xff]
        %v2152 = vld [vmem:[%s668 + $0x8] sm:$0xff]
        %v2153 = vld [vmem:[%s668 + $0x10] sm:$0xff]
        %v2154 = vld [vmem:[%s668 + $0x18] sm:$0xff]
        %v2155 = vld [vmem:[%s668 + $0x20] sm:$0xff]
        %v2156 = vld [vmem:[%s668 + $0x28] sm:$0xff]
        %v2157 = vld [vmem:[%s668 + $0x30] sm:$0xff]
        %v2158 = vld [vmem:[%s668 + $0x38] sm:$0xff]
        %v2159 = vld [vmem:[%s668 + $0x40] sm:$0xff]
        %v2160 = vld [vmem:[%s668 + $0x48] sm:$0xff]
        %v2161 = vld [vmem:[%s668 + $0x50] sm:$0xff]
        %v2162 = vld [vmem:[%s668 + $0x58] sm:$0xff]
        %v2163 = vld [vmem:[%s668 + $0x60] sm:$0xff]
        %v2164 = vld [vmem:[%s668 + $0x68] sm:$0xff]
        %v2165 = vld [vmem:[%s668 + $0x70] sm:$0xff]
        %v2166 = vld [vmem:[%s668 + $0x78] sm:$0xff]
        %v2167 = vld [vmem:[%s773] sm:$0x3]
        %v2169 = vlaneseq
        %v2170 = vshrl.u32 %v2169, 7
        %v2171 = vsub.s32 0, %v2170
        %v2172 = vrot.slane %v2167, %v2171
        %v2173 = vlaneseq
        %v2174 = vshrl.u32 %v2173, 7
        %v2175 = vsub.s32 1, %v2174
        %v2176 = vrot.slane %v2167, %v2175
        %v2195 = vunpack.c.l.b16 %v2151
        %v2196 = vunpack.c.h.b16 %v2151
        %v2197 = vunpack.c.l.b16 %v2152
        %v2198 = vunpack.c.h.b16 %v2152
        %v2199 = vunpack.c.l.b16 %v2153
        %v2200 = vunpack.c.h.b16 %v2153
        %v2201 = vunpack.c.l.b16 %v2154
        %v2202 = vunpack.c.h.b16 %v2154
        %v2203 = vunpack.c.l.b16 %v2155
        %v2204 = vunpack.c.h.b16 %v2155
        %v2205 = vunpack.c.l.b16 %v2156
        %v2206 = vunpack.c.h.b16 %v2156
        %v2207 = vunpack.c.l.b16 %v2157
        %v2208 = vunpack.c.h.b16 %v2157
        %v2209 = vunpack.c.l.b16 %v2158
        %v2210 = vunpack.c.h.b16 %v2158
        %v2211 = vunpack.c.l.b16 %v2159
        %v2212 = vunpack.c.h.b16 %v2159
        %v2213 = vunpack.c.l.b16 %v2160
        %v2214 = vunpack.c.h.b16 %v2160
        %v2215 = vunpack.c.l.b16 %v2161
        %v2216 = vunpack.c.h.b16 %v2161
        %v2217 = vunpack.c.l.b16 %v2162
        %v2218 = vunpack.c.h.b16 %v2162
        %v2219 = vunpack.c.l.b16 %v2163
        %v2220 = vunpack.c.h.b16 %v2163
        %v2221 = vunpack.c.l.b16 %v2164
        %v2222 = vunpack.c.h.b16 %v2164
        %v2223 = vunpack.c.l.b16 %v2165
        %v2224 = vunpack.c.h.b16 %v2165
        %v2225 = vunpack.c.l.b16 %v2166
        %v2226 = vunpack.c.h.b16 %v2166
        %v2227 = vpack.c.b16 %v2197, %v2195
        %v2228 = vpack.c.b16 %v2198, %v2196
        %v2229 = vpack.c.b16 %v2201, %v2199
        %v2230 = vpack.c.b16 %v2202, %v2200
        %v2231 = vpack.c.b16 %v2205, %v2203
        %v2232 = vpack.c.b16 %v2206, %v2204
        %v2233 = vpack.c.b16 %v2209, %v2207
        %v2234 = vpack.c.b16 %v2210, %v2208
        %v2235 = vpack.c.b16 %v2213, %v2211
        %v2236 = vpack.c.b16 %v2214, %v2212
        %v2237 = vpack.c.b16 %v2217, %v2215
        %v2238 = vpack.c.b16 %v2218, %v2216
        %v2239 = vpack.c.b16 %v2221, %v2219
        %v2240 = vpack.c.b16 %v2222, %v2220
        %v2241 = vpack.c.b16 %v2225, %v2223
        %v2242 = vpack.c.b16 %v2226, %v2224
        %2259 = vmatprep.subr.bf16.mxu0 %v2242
        %2260 = vmatpush1.bf16.msra.mxu0 %v2241
        %2261 = vmatprep.subr.bf16.mxu0 %v2240
        %2262 = vmatpush1.bf16.msra.mxu0 %v2239
        %2263 = vmatprep.subr.bf16.mxu0 %v2238
        %2264 = vmatpush1.bf16.msra.mxu0 %v2237
        %2265 = vmatprep.subr.bf16.mxu0 %v2236
        %2266 = vmatpush1.bf16.msra.mxu0 %v2235
        %2267 = vmatprep.subr.bf16.mxu0 %v2234
        %2268 = vmatpush1.bf16.msra.mxu0 %v2233
        %2269 = vmatprep.subr.bf16.mxu0 %v2232
        %2270 = vmatpush1.bf16.msra.mxu0 %v2231
        %2271 = vmatprep.subr.bf16.mxu0 %v2230
        %2272 = vmatpush1.bf16.msra.mxu0 %v2229
        %2273 = vmatprep.subr.bf16.mxu0 %v2228
        %2274 = vmatpush1.bf16.msra.mxu0 %v2227
        %2275 = vmatprep.subr.bf16.mxu0 0
        %2276 = vmatpush2.bf16.msra.mxu0 0
        %2277 = vmatprep.subr.bf16.mxu0 0
        %2278 = vmatpush2.bf16.msra.mxu0 0
        %2279 = vmatprep.subr.bf16.mxu0 0
        %2280 = vmatpush2.bf16.msra.mxu0 0
        %2281 = vmatprep.subr.bf16.mxu0 0
        %2282 = vmatpush2.bf16.msra.mxu0 0
        %2283 = vmatprep.subr.bf16.mxu0 0
        %2284 = vmatpush2.bf16.msra.mxu0 0
        %2285 = vmatprep.subr.bf16.mxu0 0
        %2286 = vmatpush2.bf16.msra.mxu0 0
        %2287 = vmatprep.subr.bf16.mxu0 0
        %2288 = vmatpush2.bf16.msra.mxu0 0
        %2289 = vmatprep.subr.bf16.mxu0 0
        %2290 = vmatpush2.bf16.msra.mxu0 0
        %2291 = vmatprep.mubr.bf16.mxu0 0
        %2292 = vmatmul.mubr.bf16.gmra.mxu0 %v2150
        %v2293 = vpop.f32.mrf.mxu0
        %v2294 = vadd.f32 %v2172, %v2293
        %v2295 = vpop.f32.mrf.mxu0
        %v2296 = vadd.f32 %v2176, %v2295
        %v2297 = vpop.f32.mrf.mxu0
        %v2298 = vadd.f32 %v2172, %v2297
        %v2299 = vpop.f32.mrf.mxu0
        %v2300 = vadd.f32 %v2176, %v2299
        %2301 = vdwg.mxu0
        %v2302 = vmax.f32 %v2294, 0.0
        %v2303 = vmax.f32 %v2296, 0.0
        %v2304 = vmax.f32 %v2298, 0.0
        %v2305 = vmax.f32 %v2300, 0.0
        %v2306 = vpack.c.bf16 %v2304, %v2302
        %v2307 = vpack.c.bf16 %v2305, %v2303
        %v2308 = vld [vmem:[%s677] sm:$0xf]
        %v2309 = vld [vmem:[%s677 + $0x4] sm:$0xf]
        %v2310 = vld [vmem:[%s677 + $0x8] sm:$0xf]
        %v2311 = vld [vmem:[%s677 + $0xc] sm:$0xf]
        %v2312 = vld [vmem:[%s677 + $0x10] sm:$0xf]
        %v2313 = vld [vmem:[%s677 + $0x14] sm:$0xf]
        %v2314 = vld [vmem:[%s677 + $0x18] sm:$0xf]
        %v2315 = vld [vmem:[%s677 + $0x1c] sm:$0xf]
        %v2316 = vld [vmem:[%s677 + $0x20] sm:$0xf]
        %v2317 = vld [vmem:[%s677 + $0x24] sm:$0xf]
        %v2318 = vld [vmem:[%s677 + $0x28] sm:$0xf]
        %v2319 = vld [vmem:[%s677 + $0x2c] sm:$0xf]
        %v2320 = vld [vmem:[%s677 + $0x30] sm:$0xf]
        %v2321 = vld [vmem:[%s677 + $0x34] sm:$0xf]
        %v2322 = vld [vmem:[%s677 + $0x38] sm:$0xf]
        %v2323 = vld [vmem:[%s677 + $0x3c] sm:$0xf]
        %v2324 = vld [vmem:[%s677 + $0x40] sm:$0xf]
        %v2325 = vld [vmem:[%s677 + $0x44] sm:$0xf]
        %v2326 = vld [vmem:[%s677 + $0x48] sm:$0xf]
        %v2327 = vld [vmem:[%s677 + $0x4c] sm:$0xf]
        %v2328 = vld [vmem:[%s677 + $0x50] sm:$0xf]
        %v2329 = vld [vmem:[%s677 + $0x54] sm:$0xf]
        %v2330 = vld [vmem:[%s677 + $0x58] sm:$0xf]
        %v2331 = vld [vmem:[%s677 + $0x5c] sm:$0xf]
        %v2332 = vld [vmem:[%s677 + $0x60] sm:$0xf]
        %v2333 = vld [vmem:[%s677 + $0x64] sm:$0xf]
        %v2334 = vld [vmem:[%s677 + $0x68] sm:$0xf]
        %v2335 = vld [vmem:[%s677 + $0x6c] sm:$0xf]
        %v2336 = vld [vmem:[%s677 + $0x70] sm:$0xf]
        %v2337 = vld [vmem:[%s677 + $0x74] sm:$0xf]
        %v2338 = vld [vmem:[%s677 + $0x78] sm:$0xf]
        %v2339 = vld [vmem:[%s677 + $0x7c] sm:$0xf]
        %v2340 = vld [vmem:[%s776] sm:$0x1]
        %v2342 = vlaneseq
        %v2343 = vshrl.u32 %v2342, 7
        %v2344 = vsub.s32 0, %v2343
        %v2345 = vrot.slane %v2340, %v2344
        %v2379 = vunpack.c.l.b16 %v2308
        %v2380 = vunpack.c.l.b16 %v2309
        %v2381 = vunpack.c.l.b16 %v2310
        %v2382 = vunpack.c.l.b16 %v2311
        %v2383 = vunpack.c.l.b16 %v2312
        %v2384 = vunpack.c.l.b16 %v2313
        %v2385 = vunpack.c.l.b16 %v2314
        %v2386 = vunpack.c.l.b16 %v2315
        %v2387 = vunpack.c.l.b16 %v2316
        %v2388 = vunpack.c.l.b16 %v2317
        %v2389 = vunpack.c.l.b16 %v2318
        %v2390 = vunpack.c.l.b16 %v2319
        %v2391 = vunpack.c.l.b16 %v2320
        %v2392 = vunpack.c.l.b16 %v2321
        %v2393 = vunpack.c.l.b16 %v2322
        %v2394 = vunpack.c.l.b16 %v2323
        %v2395 = vunpack.c.l.b16 %v2324
        %v2396 = vunpack.c.l.b16 %v2325
        %v2397 = vunpack.c.l.b16 %v2326
        %v2398 = vunpack.c.l.b16 %v2327
        %v2399 = vunpack.c.l.b16 %v2328
        %v2400 = vunpack.c.l.b16 %v2329
        %v2401 = vunpack.c.l.b16 %v2330
        %v2402 = vunpack.c.l.b16 %v2331
        %v2403 = vunpack.c.l.b16 %v2332
        %v2404 = vunpack.c.l.b16 %v2333
        %v2405 = vunpack.c.l.b16 %v2334
        %v2406 = vunpack.c.l.b16 %v2335
        %v2407 = vunpack.c.l.b16 %v2336
        %v2408 = vunpack.c.l.b16 %v2337
        %v2409 = vunpack.c.l.b16 %v2338
        %v2410 = vunpack.c.l.b16 %v2339
        %v2411 = vpack.c.b16 %v2380, %v2379
        %v2412 = vpack.c.b16 %v2382, %v2381
        %v2413 = vpack.c.b16 %v2384, %v2383
        %v2414 = vpack.c.b16 %v2386, %v2385
        %v2415 = vpack.c.b16 %v2388, %v2387
        %v2416 = vpack.c.b16 %v2390, %v2389
        %v2417 = vpack.c.b16 %v2392, %v2391
        %v2418 = vpack.c.b16 %v2394, %v2393
        %v2419 = vpack.c.b16 %v2396, %v2395
        %v2420 = vpack.c.b16 %v2398, %v2397
        %v2421 = vpack.c.b16 %v2400, %v2399
        %v2422 = vpack.c.b16 %v2402, %v2401
        %v2423 = vpack.c.b16 %v2404, %v2403
        %v2424 = vpack.c.b16 %v2406, %v2405
        %v2425 = vpack.c.b16 %v2408, %v2407
        %v2426 = vpack.c.b16 %v2410, %v2409
        %2443 = vmatprep.subr.bf16.mxu0 0
        %2444 = vmatpush1.bf16.msra.mxu0 %v2418
        %2445 = vmatprep.subr.bf16.mxu0 0
        %2446 = vmatpush1.bf16.msra.mxu0 %v2417
        %2447 = vmatprep.subr.bf16.mxu0 0
        %2448 = vmatpush1.bf16.msra.mxu0 %v2416
        %2449 = vmatprep.subr.bf16.mxu0 0
        %2450 = vmatpush1.bf16.msra.mxu0 %v2415
        %2451 = vmatprep.subr.bf16.mxu0 0
        %2452 = vmatpush1.bf16.msra.mxu0 %v2414
        %2453 = vmatprep.subr.bf16.mxu0 0
        %2454 = vmatpush1.bf16.msra.mxu0 %v2413
        %2455 = vmatprep.subr.bf16.mxu0 0
        %2456 = vmatpush1.bf16.msra.mxu0 %v2412
        %2457 = vmatprep.subr.bf16.mxu0 0
        %2458 = vmatpush1.bf16.msra.mxu0 %v2411
        %2459 = vmatprep.subr.bf16.mxu0 0
        %2460 = vmatpush2.bf16.msra.mxu0 %v2426
        %2461 = vmatprep.subr.bf16.mxu0 0
        %2462 = vmatpush2.bf16.msra.mxu0 %v2425
        %2463 = vmatprep.subr.bf16.mxu0 0
        %2464 = vmatpush2.bf16.msra.mxu0 %v2424
        %2465 = vmatprep.subr.bf16.mxu0 0
        %2466 = vmatpush2.bf16.msra.mxu0 %v2423
        %2467 = vmatprep.subr.bf16.mxu0 0
        %2468 = vmatpush2.bf16.msra.mxu0 %v2422
        %2469 = vmatprep.subr.bf16.mxu0 0
        %2470 = vmatpush2.bf16.msra.mxu0 %v2421
        %2471 = vmatprep.subr.bf16.mxu0 0
        %2472 = vmatpush2.bf16.msra.mxu0 %v2420
        %2473 = vmatprep.subr.bf16.mxu0 0
        %2474 = vmatpush2.bf16.msra.mxu0 %v2419
        %2475 = vmatprep.mubr.bf16.mxu0 %v2307
        %2476 = vmatmul.mubr.bf16.gmra.mxu0 %v2306
        %v2477 = vpop.f32.mrf.mxu0
        %v2478 = vadd.f32 %v2345, %v2477
        %v2479 = vpop.f32.mrf.mxu0
        %v2480 = vpop.f32.mrf.mxu0
        %v2481 = vadd.f32 %v2345, %v2480
        %v2482 = vpop.f32.mrf.mxu0
        %2483 = vdwg.mxu0
        %v2484 = vadd.f32 %v2148, %v2478
        %v2485 = vadd.f32 %v2149, %v2481
        %2486 = vadd.xlane.f32.xlu0 %v2484
        %v2487 = vpop.xlane.xlu0 %2486
        %2488 = vadd.xlane.f32.xlu0 %v2485
        %v2489 = vpop.xlane.xlu0 %2488
        %v2490 = vmul.f32 %v2487, %v2113
        %v2491 = vmul.f32 %v2489, %v2113
        %v2492 = vsub.f32 %v2484, %v2490
        %v2493 = vsub.f32 %v2485, %v2491
        %v2494 = vmul.f32 %v2492, %v2492
        %v2495 = vmul.f32 %v2493, %v2493
        %2496 = vadd.xlane.f32.xlu0 %v2494
        %v2497 = vpop.xlane.xlu0 %2496
        %2498 = vadd.xlane.f32.xlu0 %v2495
        %v2499 = vpop.xlane.xlu0 %2498
        %v2500 = vmul.f32 %v2497, %v2113
        %v2501 = vmul.f32 %v2499, %v2113
        %v2502 = vadd.f32 %v2500, 1e-05
        %v2503 = vadd.f32 %v2501, 1e-05
        %v2504 = vrsqrt.pop %v2502
        %v2505 = vrsqrt.pop %v2503
        %v2506 = vmul.f32 %v2492, %v2504
        %v2507 = vmul.f32 %v2493, %v2505
        %v2508 = vld [vmem:[%s779] sm:$0x1]
        %v2510 = vlaneseq
        %v2511 = vshrl.u32 %v2510, 7
        %v2512 = vsub.s32 0, %v2511
        %v2513 = vrot.slane %v2508, %v2512
        %v2515 = vmul.f32 %v2506, %v2513
        %v2516 = vmul.f32 %v2507, %v2513
        %v2517 = vld [vmem:[%s782] sm:$0x1]
        %v2519 = vlaneseq
        %v2520 = vshrl.u32 %v2519, 7
        %v2521 = vsub.s32 0, %v2520
        %v2522 = vrot.slane %v2517, %v2521
        %v2524 = vadd.f32 %v2515, %v2522
        %v2525 = vadd.f32 %v2516, %v2522
        %2526 = vst [vmem:[#allocation12] sm:$0xff] %v2524
        %2527 = vst [vmem:[#allocation12 + $0x8] sm:$0xff] %v2525
        // Predicated region
        $region109: #{tpu_custom_call.1} parent=75 // pred_check
          %p2528 = pneg %p422
        $region110: #{tpu_custom_call.1} parent=75 // pred_check_branch
          %2530 = sbr.rel (%p2528) target = $region112
        $region111: #{tpu_custom_call.1} parent=75 // pred_region
          %s2531 = smul.u32 2, %s32
          %s2533 = ssub.s32 256, 256
          %2534 = vsyncadd [#allocation4], %s2533
          %s2535 = smul.addr %s2531, 128
          %s2536 = scalar_lea.hbm %s14, %s2535
          %s2537 = sshll.u32 [#allocation12], 4
          %s2538 = int_to_ptr.vmem [resolvable:$true] %s2537
          %2543 = dma.vmem_to_hbm [thread:$0]  %s2538, 256, %s2536, [#allocation4], 128, 128, 8
        $region112: #{tpu_custom_call.1} parent=75 // pred_fallthru
          _
        // Predicated region
        $region113: #{tpu_custom_call.1} parent=75 // pred_check
          %p2544 = pneg %p422
        $region114: #{tpu_custom_call.1} parent=75 // pred_check_branch
          %2546 = sbr.rel (%p2544) target = $region116
        $region115: #{tpu_custom_call.1} parent=75 // pred_region
          %2547 = dma.done [#allocation4], 256
        $region116: #{tpu_custom_call.1} parent=75 // pred_fallthru
          _
      $region76: #{tpu_custom_call.1} parent=5 // pred_fallthru
        _
      %p2548 = scmp.le.s32.totalorder 2, %s23
      // Predicated region
      $region117: #{tpu_custom_call.1} parent=5 // pred_check
        %p2549 = pneg %p2548
      $region118: #{tpu_custom_call.1} parent=5 // pred_check_branch
        %2551 = sbr.rel (%p2549) target = $region120
      $region119: #{tpu_custom_call.1} parent=5 // pred_region
        %s2552 = ssub.s32 %s23, 2
      $region120: #{tpu_custom_call.1} parent=5 // pred_fallthru
        _
    $region6: #{tpu_custom_call.1} parent=1 // loop_footer
      %s27 = sadd.s32 1, %s23
    $region7: #{tpu_custom_call.1} parent=1 // loop_footer_branch
      %22 = sbr.rel target = $region3
    $region8: #{tpu_custom_call.1} parent=1 // loop_exit
      _
    %2553 = vsyncpa [#allocation3], 1
    %s2554 = scalar_lea.sflag [#allocation3], 1
    %2555 = vsyncpa %s2554, 1
    %2556 = vsyncpa [#allocation6], 1
    %2557 = vsyncpa [#allocation4], 1
    %s2558 = scalar_lea.sflag [#allocation4], 1
    %2559 = vsyncpa %s2558, 1

</llo_original>
